<compile_context>
chip_gen: v7x
topology: tpu7x:2x2x1
jax: 0.10.0
libtpu: 0.0.40
codegen_flags: <defaults>
</compile_context>

<pallas_src>
import math

import jax
import jax.numpy as jnp
from jax.experimental import pallas as pl
from jax.experimental.pallas import tpu as pltpu

_LANE = 128        # minor-dim (lane) tile
_BATCH_ALIGN = 16  # sublane alignment for batch tiles (native bf16 tiling)


def _round_up(x, m):
    return (x + m - 1) // m * m


# ---------------------------------------------------------------------------
# One-time parameter packing — runs OUTSIDE the per-call jitted forward.
# ---------------------------------------------------------------------------
def pack_params(params):
    """Pad features to 128-lane multiples, pre-transpose to (Fin, Fout), bf16.

    Returns (weights_p, biases_p, sizes):
      weights_p: tuple of bf16 (Fin_p, Fout_p)
      biases_p : tuple of f32  (1, Fout_p)
      sizes    : python tuple of the true (unpadded) feature dims.
    """
    sizes = (params[0][0].shape[1],) + tuple(w.shape[0] for w, _ in params)
    psizes = [_round_up(s, _LANE) for s in sizes]
    weights_p, biases_p = [], []
    for l, (w, b) in enumerate(params):
        fin, fout = sizes[l], sizes[l + 1]
        pin, pout = psizes[l], psizes[l + 1]
        w_p = jnp.zeros((pin, pout), jnp.bfloat16)
        w_p = w_p.at[:fin, :fout].set(w.T.astype(jnp.bfloat16))   # (Fin, Fout)
        b_p = jnp.zeros((1, pout), jnp.float32)
        b_p = b_p.at[:, :fout].set(b.reshape(1, fout).astype(jnp.float32))
        weights_p.append(w_p)
        biases_p.append(b_p)
    return tuple(weights_p), tuple(biases_p), sizes


# ---------------------------------------------------------------------------
# Fused kernel: whole layer stack in one pallas_call, activations never
# leave VMEM/vregs; weights are VMEM-resident and grid-invariant.
# ---------------------------------------------------------------------------
def _make_fused_mlp_kernel(n_layers):
    def kernel(*refs):
        x_ref, o_ref = refs[0], refs[-1]
        wb = refs[1:-1]
        h = x_ref[...].astype(jnp.bfloat16)          # cast in-register
        for l in range(n_layers):
            w_ref = wb[2 * l]                        # bf16 (Fin_p, Fout_p)
            b_ref = wb[2 * l + 1]                    # f32  (1, Fout_p)
            acc = jnp.dot(h, w_ref[...], preferred_element_type=jnp.float32)
            a = jnp.maximum(acc + b_ref[...], 0.0)   # bias + ReLU in f32 (VPU)
            h = a.astype(jnp.bfloat16) if l + 1 < n_layers else a
        o_ref[...] = h.astype(o_ref.dtype)
    return kernel


# ---------------------------------------------------------------------------
# Streaming fallback: one pallas_call per layer, weights tiled over Fout.
# Used when the resident-weight footprint exceeds the VMEM budget (v7x 64MiB).
# ---------------------------------------------------------------------------
def _layer_kernel(x_ref, w_ref, b_ref, o_ref):
    acc = jnp.dot(x_ref[...].astype(jnp.bfloat16), w_ref[...],
                  preferred_element_type=jnp.float32)
    o_ref[...] = jnp.maximum(acc + b_ref[...], 0.0).astype(o_ref.dtype)


def _mlp_forward_streaming(x_p, weights_p, biases_p, *, tb, b_pad, out_dtype):
    # TODO(synk): streams whole-K weight slabs; a K-tiled variant with an f32
    # VMEM accumulator would be needed for extremely large Fin.
    n_layers = len(weights_p)
    h = x_p
    for l in range(n_layers):
        w_p, b_p = weights_p[l], biases_p[l]
        finp, foutp = w_p.shape
        tn = 512 if foutp % 512 == 0 else (256 if foutp % 256 == 0 else 128)
        layer_dtype = jnp.bfloat16 if l + 1 < n_layers else out_dtype
        x_b = 2 * tb * finp * h.dtype.itemsize
        w_b = 2 * finp * tn * 2
        bb_b = 2 * tn * 4
        o_b = 2 * tb * tn * jnp.dtype(layer_dtype).itemsize
        vmem_limit = int(min(max(x_b + w_b + bb_b + o_b + tb * tn * 4
                                 + (16 << 20), 32 << 20), 112 << 20))
        h = pl.pallas_call(
            _layer_kernel,
            out_shape=jax.ShapeDtypeStruct((b_pad, foutp), layer_dtype),
            grid_spec=pltpu.PrefetchScalarGridSpec(
                num_scalar_prefetch=0,
                grid=(b_pad // tb, foutp // tn),
                in_specs=[pl.BlockSpec((tb, finp), lambda i, j: (i, 0)),
                          pl.BlockSpec((finp, tn), lambda i, j: (0, j)),
                          pl.BlockSpec((1, tn), lambda i, j: (0, j))],
                out_specs=pl.BlockSpec((tb, tn), lambda i, j: (i, j)),
            ),
            compiler_params=pltpu.CompilerParams(
                dimension_semantics=("parallel", "parallel"),
                vmem_limit_bytes=vmem_limit,
            ),
        )(h, w_p, b_p)
    return h


# ---------------------------------------------------------------------------
# Forward wrapper (jit this; packing stays outside).
# ---------------------------------------------------------------------------
def mlp_forward(x, weights_p, biases_p, sizes, *,
                batch_tile=512,
                out_dtype=jnp.float32,        # pass bf16 on v5e/v6e to halve writeback
                vmem_budget_bytes=48 << 20,   # fused-path residency budget (v7x-safe)
                weight_buffers=1):            # None -> default double-buffering
    """y = relu(... relu(relu(x W1^T + b1) W2^T + b2) ...)."""
    B, F0 = x.shape
    n_layers = len(weights_p)
    assert F0 == sizes[0]
    psizes = [weights_p[0].shape[0]] + [w.shape[1] for w in weights_p]

    # ---- batch tiling -------------------------------------------------------
    if B <= batch_tile:
        # Small batch: aim for >= 2 grid steps so both v7x TensorCores get work
        # (negligible cost on single-TC v5e/v6e: one extra ~0.35us grid step).
        tb = _round_up(max(1, -(-B // 2)), _BATCH_ALIGN)
        b_pad = _round_up(B, tb)
        if b_pad // tb < 2:
            b_pad = 2 * tb
    else:
        tb = batch_tile
        b_pad = _round_up(B, tb)
    grid = (b_pad // tb,)

    # ---- input: pad/cast only when actually needed --------------------------
    needs_pad = (b_pad != B) or (psizes[0] != F0)
    if needs_pad:
        x_p = jnp.zeros((b_pad, psizes[0]), jnp.bfloat16)
        x_p = x_p.at[:B, :F0].set(x.astype(jnp.bfloat16))
    else:
        x_p = x   # kernel casts the first matmul operand in-register

    # ---- VMEM footprint / fused-vs-streaming decision -----------------------
    if weight_buffers is None:
        wb_kwargs, w_bufs = {}, 2
    else:
        wb_kwargs, w_bufs = dict(pipeline_mode=pl.Buffered(weight_buffers)), weight_buffers
    w_bytes = w_bufs * sum(int(w.size) * w.dtype.itemsize for w in weights_p)
    bias_bytes = w_bufs * sum(int(b.size) * b.dtype.itemsize for b in biases_p)
    x_bytes = 2 * tb * psizes[0] * x_p.dtype.itemsize
    o_bytes = 2 * tb * psizes[-1] * jnp.dtype(out_dtype).itemsize
    act_bytes = 3 * tb * max(psizes) * 4          # live f32 acc + bf16 copies
    footprint = w_bytes + bias_bytes + x_bytes + o_bytes + act_bytes

    if footprint > vmem_budget_bytes:
        out = _mlp_forward_streaming(x_p, weights_p, biases_p,
                                     tb=tb, b_pad=b_pad, out_dtype=out_dtype)
        return out[:B, :sizes[-1]]

    # ---- fused path ----------------------------------------------------------
    in_specs = [pl.BlockSpec((tb, psizes[0]), lambda i: (i, 0))]
    for l in range(n_layers):
        pin, pout = psizes[l], psizes[l + 1]
        # Grid-invariant blocks: fetched once, VMEM-resident across all batch
        # tiles; single-buffered (a second buffer would be pure waste).
        in_specs.append(pl.BlockSpec((pin, pout), lambda i: (0, 0), **wb_kwargs))
        in_specs.append(pl.BlockSpec((1, pout), lambda i: (0, 0), **wb_kwargs))
    out_spec = pl.BlockSpec((tb, psizes[-1]), lambda i: (i, 0))

    vmem_limit = int(min(max(footprint + (16 << 20), 32 << 20), 112 << 20))

    out = pl.pallas_call(
        _make_fused_mlp_kernel(n_layers),
        out_shape=jax.ShapeDtypeStruct((b_pad, psizes[-1]), out_dtype),
        grid_spec=pltpu.PrefetchScalarGridSpec(
            num_scalar_prefetch=0,
            grid=grid,
            in_specs=in_specs,
            out_specs=out_spec,
        ),
        compiler_params=pltpu.CompilerParams(
            dimension_semantics=("parallel",),
            vmem_limit_bytes=vmem_limit,
        ),
    )(x_p, *[a for pair in zip(weights_p, biases_p) for a in pair])

    return out[:B, :sizes[-1]]


def init_mlp_params(key, sizes):
    """PyTorch-Linear-style init: U(-1/sqrt(fan_in), 1/sqrt(fan_in))."""
    params = []
    for i in range(len(sizes) - 1):
        key, kw, kb = jax.random.split(key, 3)
        fan_in, fan_out = sizes[i], sizes[i + 1]
        bound = 1.0 / math.sqrt(fan_in)
        w = jax.random.uniform(kw, (fan_out, fan_in), jnp.float32, -bound, bound)
        b = jax.random.uniform(kb, (fan_out,), jnp.float32, -bound, bound)
        params.append((w, b))
    return params


if __name__ == "__main__":
    key = jax.random.PRNGKey(0)
    k_param, k_x = jax.random.split(key)

    sizes = [32, 64, 48, 16]       # small sizes consistent with MLP(sizes)
    batch = 8

    params = init_mlp_params(k_param, sizes)
    x = jax.random.normal(k_x, (batch, sizes[0]), jnp.float32)

    # One-time packing, OUTSIDE the jitted per-call path (review item 1).
    weights_p, biases_p, sizes_t = pack_params(params)

    def make_fwd(**kw):
        return jax.jit(lambda xx, ww, bb: mlp_forward(xx, ww, bb, sizes_t, **kw))

    try:
        out = jax.block_until_ready(make_fwd()(x, weights_p, biases_p))
    except Exception:
        # Guard: if this Pallas build does not honor per-BlockSpec
        # pipeline_mode, rerun with default double-buffered weights.
        out = jax.block_until_ready(
            make_fwd(weight_buffers=None)(x, weights_p, biases_p))
    assert out.shape == (batch, sizes[-1])

    # Reference 1: mimics the kernel numerics (bf16 MXU operands, f32
    # accumulation, f32 bias + ReLU) -> tight tolerance.
    h = x.astype(jnp.bfloat16)
    for li, (w, b) in enumerate(params):
        acc = jnp.dot(h, w.T.astype(jnp.bfloat16),
                      preferred_element_type=jnp.float32)
        a = jnp.maximum(acc + b, 0.0)
        h = a.astype(jnp.bfloat16) if li + 1 < len(params) else a
    assert bool(jnp.allclose(out, h, atol=1e-3, rtol=1e-3))

    # Reference 2: pure-f32 semantic check of the original module's forward.
    ref = x
    for w, b in params:
        ref = jnp.maximum(ref @ w.T + b, 0.0)
    assert bool(jnp.allclose(out, ref, atol=5e-2, rtol=5e-2))

    # Also exercise the streaming (weights-exceed-VMEM-budget) fallback path.
    out_s = jax.block_until_ready(
        make_fwd(vmem_budget_bytes=0)(x, weights_p, biases_p))
    assert bool(jnp.allclose(out_s, h, atol=1e-3, rtol=1e-3))

    print("KERNEL_OK")
</pallas_src>

<mosaic_0001>
module attributes {stable_mosaic.version = 11 : i64} {
  func.func @kernel(%arg0: i32, %arg1: memref<16x128xbf16, #tpu.memory_space<vmem>>, %arg2: memref<128x128xbf16, #tpu.memory_space<vmem>>, %arg3: memref<1x128xf32, #tpu.memory_space<vmem>>, %arg4: memref<128x128xbf16, #tpu.memory_space<vmem>>, %arg5: memref<1x128xf32, #tpu.memory_space<vmem>>, %arg6: memref<128x128xbf16, #tpu.memory_space<vmem>>, %arg7: memref<1x128xf32, #tpu.memory_space<vmem>>, %arg8: memref<16x128xf32, #tpu.memory_space<vmem>>) attributes {dimension_semantics = [#tpu.dimension_semantics<parallel>], iteration_bounds = array<i64: 2>, scalar_prefetch = 0 : i64, scratch_operands = 0 : i64, tpu.core_type = #tpu.core_type<tc>, window_params = [{transform_indices = @transform_0, window_bounds = array<i64: 16, 128>}, {pipeline_mode = #tpu.pipeline_mode<synchronous>, transform_indices = @transform_1, window_bounds = array<i64: 128, 128>}, {pipeline_mode = #tpu.pipeline_mode<synchronous>, transform_indices = @transform_2, window_bounds = array<i64: 1, 128>}, {pipeline_mode = #tpu.pipeline_mode<synchronous>, transform_indices = @transform_3, window_bounds = array<i64: 128, 128>}, {pipeline_mode = #tpu.pipeline_mode<synchronous>, transform_indices = @transform_4, window_bounds = array<i64: 1, 128>}, {pipeline_mode = #tpu.pipeline_mode<synchronous>, transform_indices = @transform_5, window_bounds = array<i64: 128, 128>}, {pipeline_mode = #tpu.pipeline_mode<synchronous>, transform_indices = @transform_6, window_bounds = array<i64: 1, 128>}, {transform_indices = @transform_7, window_bounds = array<i64: 16, 128>}]} {
    %c0 = arith.constant 0 : index
    %c0_0 = arith.constant 0 : index
    %0 = vector.load %arg1[%c0, %c0_0] : memref<16x128xbf16, #tpu.memory_space<vmem>>, vector<16x128xbf16>
    %c0_1 = arith.constant 0 : index
    %c0_2 = arith.constant 0 : index
    %1 = vector.load %arg2[%c0_1, %c0_2] : memref<128x128xbf16, #tpu.memory_space<vmem>>, vector<128x128xbf16>
    %cst = arith.constant dense<0.000000e+00> : vector<16x128xf32>
    %2 = tpu.matmul %0, %1, %cst {dimension_numbers = #tpu.dot_dimension_numbers<[1], [0], [0], [1], [0, 0, 1, 1], [], []>} : vector<16x128xbf16>, vector<128x128xbf16>, vector<16x128xf32> -> vector<16x128xf32>
    %c0_3 = arith.constant 0 : index
    %c0_4 = arith.constant 0 : index
    %3 = vector.load %arg3[%c0_3, %c0_4] : memref<1x128xf32, #tpu.memory_space<vmem>>, vector<1x128xf32>
    %4 = vector.broadcast %3 : vector<1x128xf32> to vector<16x128xf32>
    %5 = arith.addf %2, %4 : vector<16x128xf32>
    %cst_5 = arith.constant 0.000000e+00 : f32
    %6 = vector.broadcast %cst_5 : f32 to vector<16x128xf32>
    %7 = arith.maximumf %5, %6 : vector<16x128xf32>
    %8 = arith.truncf %7 : vector<16x128xf32> to vector<16x128xbf16>
    %c0_6 = arith.constant 0 : index
    %c0_7 = arith.constant 0 : index
    %9 = vector.load %arg4[%c0_6, %c0_7] : memref<128x128xbf16, #tpu.memory_space<vmem>>, vector<128x128xbf16>
    %cst_8 = arith.constant dense<0.000000e+00> : vector<16x128xf32>
    %10 = tpu.matmul %8, %9, %cst_8 {dimension_numbers = #tpu.dot_dimension_numbers<[1], [0], [0], [1], [0, 0, 1, 1], [], []>} : vector<16x128xbf16>, vector<128x128xbf16>, vector<16x128xf32> -> vector<16x128xf32>
    %c0_9 = arith.constant 0 : index
    %c0_10 = arith.constant 0 : index
    %11 = vector.load %arg5[%c0_9, %c0_10] : memref<1x128xf32, #tpu.memory_space<vmem>>, vector<1x128xf32>
    %12 = vector.broadcast %11 : vector<1x128xf32> to vector<16x128xf32>
    %13 = arith.addf %10, %12 : vector<16x128xf32>
    %cst_11 = arith.constant 0.000000e+00 : f32
    %14 = vector.broadcast %cst_11 : f32 to vector<16x128xf32>
    %15 = arith.maximumf %13, %14 : vector<16x128xf32>
    %16 = arith.truncf %15 : vector<16x128xf32> to vector<16x128xbf16>
    %c0_12 = arith.constant 0 : index
    %c0_13 = arith.constant 0 : index
    %17 = vector.load %arg6[%c0_12, %c0_13] : memref<128x128xbf16, #tpu.memory_space<vmem>>, vector<128x128xbf16>
    %cst_14 = arith.constant dense<0.000000e+00> : vector<16x128xf32>
    %18 = tpu.matmul %16, %17, %cst_14 {dimension_numbers = #tpu.dot_dimension_numbers<[1], [0], [0], [1], [0, 0, 1, 1], [], []>} : vector<16x128xbf16>, vector<128x128xbf16>, vector<16x128xf32> -> vector<16x128xf32>
    %c0_15 = arith.constant 0 : index
    %c0_16 = arith.constant 0 : index
    %19 = vector.load %arg7[%c0_15, %c0_16] : memref<1x128xf32, #tpu.memory_space<vmem>>, vector<1x128xf32>
    %20 = vector.broadcast %19 : vector<1x128xf32> to vector<16x128xf32>
    %21 = arith.addf %18, %20 : vector<16x128xf32>
    %cst_17 = arith.constant 0.000000e+00 : f32
    %22 = vector.broadcast %cst_17 : f32 to vector<16x128xf32>
    %23 = arith.maximumf %21, %22 : vector<16x128xf32>
    %c0_18 = arith.constant 0 : index
    %c0_19 = arith.constant 0 : index
    %24 = vector.load %arg8[%c0_18, %c0_19] : memref<16x128xf32, #tpu.memory_space<vmem>>, vector<16x128xf32>
    tpu.vector_store %arg8[%c0_18, %c0_19], %23 {strides = array<i32>} : memref<16x128xf32, #tpu.memory_space<vmem>>, vector<16x128xf32>,
    return
  }
  func.func @transform_0(%arg0: i32) -> (i32, i32) {
    %c0_i32 = arith.constant 0 : i32
    %c0_i32_0 = arith.constant 0 : i32
    return %arg0, %c0_i32 : i32, i32
  }
  func.func @transform_1(%arg0: i32) -> (i32, i32) {
    %c0_i32 = arith.constant 0 : i32
    %c0_i32_0 = arith.constant 0 : i32
    %c0_i32_1 = arith.constant 0 : i32
    return %c0_i32, %c0_i32_0 : i32, i32
  }
  func.func @transform_2(%arg0: i32) -> (i32, i32) {
    %c0_i32 = arith.constant 0 : i32
    %c0_i32_0 = arith.constant 0 : i32
    %c0_i32_1 = arith.constant 0 : i32
    return %c0_i32, %c0_i32_0 : i32, i32
  }
  func.func @transform_3(%arg0: i32) -> (i32, i32) {
    %c0_i32 = arith.constant 0 : i32
    %c0_i32_0 = arith.constant 0 : i32
    %c0_i32_1 = arith.constant 0 : i32
    return %c0_i32, %c0_i32_0 : i32, i32
  }
  func.func @transform_4(%arg0: i32) -> (i32, i32) {
    %c0_i32 = arith.constant 0 : i32
    %c0_i32_0 = arith.constant 0 : i32
    %c0_i32_1 = arith.constant 0 : i32
    return %c0_i32, %c0_i32_0 : i32, i32
  }
  func.func @transform_5(%arg0: i32) -> (i32, i32) {
    %c0_i32 = arith.constant 0 : i32
    %c0_i32_0 = arith.constant 0 : i32
    %c0_i32_1 = arith.constant 0 : i32
    return %c0_i32, %c0_i32_0 : i32, i32
  }
  func.func @transform_6(%arg0: i32) -> (i32, i32) {
    %c0_i32 = arith.constant 0 : i32
    %c0_i32_0 = arith.constant 0 : i32
    %c0_i32_1 = arith.constant 0 : i32
    return %c0_i32, %c0_i32_0 : i32, i32
  }
  func.func @transform_7(%arg0: i32) -> (i32, i32) {
    %c0_i32 = arith.constant 0 : i32
    %c0_i32_0 = arith.constant 0 : i32
    return %arg0, %c0_i32 : i32, i32
  }
}

module attributes {stable_mosaic.version = 11 : i64} {
  func.func @kernel(%arg0: i32, %arg1: memref<16x128xbf16, #tpu.memory_space<vmem>>, %arg2: memref<128x128xbf16, #tpu.memory_space<vmem>>, %arg3: memref<1x128xf32, #tpu.memory_space<vmem>>, %arg4: memref<128x128xbf16, #tpu.memory_space<vmem>>, %arg5: memref<1x128xf32, #tpu.memory_space<vmem>>, %arg6: memref<128x128xbf16, #tpu.memory_space<vmem>>, %arg7: memref<1x128xf32, #tpu.memory_space<vmem>>, %arg8: memref<16x128xf32, #tpu.memory_space<vmem>>) attributes {dimension_semantics = [#tpu.dimension_semantics<parallel>], iteration_bounds = array<i64: 2>, scalar_prefetch = 0 : i64, scratch_operands = 0 : i64, tpu.core_type = #tpu.core_type<tc>, window_params = [{transform_indices = @transform_0, window_bounds = array<i64: 16, 128>}, {pipeline_mode = #tpu.pipeline_mode<synchronous>, transform_indices = @transform_1, window_bounds = array<i64: 128, 128>}, {pipeline_mode = #tpu.pipeline_mode<synchronous>, transform_indices = @transform_2, window_bounds = array<i64: 1, 128>}, {pipeline_mode = #tpu.pipeline_mode<synchronous>, transform_indices = @transform_3, window_bounds = array<i64: 128, 128>}, {pipeline_mode = #tpu.pipeline_mode<synchronous>, transform_indices = @transform_4, window_bounds = array<i64: 1, 128>}, {pipeline_mode = #tpu.pipeline_mode<synchronous>, transform_indices = @transform_5, window_bounds = array<i64: 128, 128>}, {pipeline_mode = #tpu.pipeline_mode<synchronous>, transform_indices = @transform_6, window_bounds = array<i64: 1, 128>}, {transform_indices = @transform_7, window_bounds = array<i64: 16, 128>}]} {
    %c0 = arith.constant 0 : index
    %c0_0 = arith.constant 0 : index
    %0 = vector.load %arg1[%c0, %c0_0] : memref<16x128xbf16, #tpu.memory_space<vmem>>, vector<16x128xbf16>
    %c0_1 = arith.constant 0 : index
    %c0_2 = arith.constant 0 : index
    %1 = vector.load %arg2[%c0_1, %c0_2] : memref<128x128xbf16, #tpu.memory_space<vmem>>, vector<128x128xbf16>
    %cst = arith.constant dense<0.000000e+00> : vector<16x128xf32>
    %2 = tpu.matmul %0, %1, %cst {dimension_numbers = #tpu.dot_dimension_numbers<[1], [0], [0], [1], [0, 0, 1, 1], [], []>} : vector<16x128xbf16>, vector<128x128xbf16>, vector<16x128xf32> -> vector<16x128xf32>
    %c0_3 = arith.constant 0 : index
    %c0_4 = arith.constant 0 : index
    %3 = vector.load %arg3[%c0_3, %c0_4] : memref<1x128xf32, #tpu.memory_space<vmem>>, vector<1x128xf32>
    %4 = vector.broadcast %3 : vector<1x128xf32> to vector<16x128xf32>
    %5 = arith.addf %2, %4 : vector<16x128xf32>
    %cst_5 = arith.constant 0.000000e+00 : f32
    %6 = vector.broadcast %cst_5 : f32 to vector<16x128xf32>
    %7 = arith.maximumf %5, %6 : vector<16x128xf32>
    %8 = arith.truncf %7 : vector<16x128xf32> to vector<16x128xbf16>
    %c0_6 = arith.constant 0 : index
    %c0_7 = arith.constant 0 : index
    %9 = vector.load %arg4[%c0_6, %c0_7] : memref<128x128xbf16, #tpu.memory_space<vmem>>, vector<128x128xbf16>
    %cst_8 = arith.constant dense<0.000000e+00> : vector<16x128xf32>
    %10 = tpu.matmul %8, %9, %cst_8 {dimension_numbers = #tpu.dot_dimension_numbers<[1], [0], [0], [1], [0, 0, 1, 1], [], []>} : vector<16x128xbf16>, vector<128x128xbf16>, vector<16x128xf32> -> vector<16x128xf32>
    %c0_9 = arith.constant 0 : index
    %c0_10 = arith.constant 0 : index
    %11 = vector.load %arg5[%c0_9, %c0_10] : memref<1x128xf32, #tpu.memory_space<vmem>>, vector<1x128xf32>
    %12 = vector.broadcast %11 : vector<1x128xf32> to vector<16x128xf32>
    %13 = arith.addf %10, %12 : vector<16x128xf32>
    %cst_11 = arith.constant 0.000000e+00 : f32
    %14 = vector.broadcast %cst_11 : f32 to vector<16x128xf32>
    %15 = arith.maximumf %13, %14 : vector<16x128xf32>
    %16 = arith.truncf %15 : vector<16x128xf32> to vector<16x128xbf16>
    %c0_12 = arith.constant 0 : index
    %c0_13 = arith.constant 0 : index
    %17 = vector.load %arg6[%c0_12, %c0_13] : memref<128x128xbf16, #tpu.memory_space<vmem>>, vector<128x128xbf16>
    %cst_14 = arith.constant dense<0.000000e+00> : vector<16x128xf32>
    %18 = tpu.matmul %16, %17, %cst_14 {dimension_numbers = #tpu.dot_dimension_numbers<[1], [0], [0], [1], [0, 0, 1, 1], [], []>} : vector<16x128xbf16>, vector<128x128xbf16>, vector<16x128xf32> -> vector<16x128xf32>
    %c0_15 = arith.constant 0 : index
    %c0_16 = arith.constant 0 : index
    %19 = vector.load %arg7[%c0_15, %c0_16] : memref<1x128xf32, #tpu.memory_space<vmem>>, vector<1x128xf32>
    %20 = vector.broadcast %19 : vector<1x128xf32> to vector<16x128xf32>
    %21 = arith.addf %18, %20 : vector<16x128xf32>
    %cst_17 = arith.constant 0.000000e+00 : f32
    %22 = vector.broadcast %cst_17 : f32 to vector<16x128xf32>
    %23 = arith.maximumf %21, %22 : vector<16x128xf32>
    %c0_18 = arith.constant 0 : index
    %c0_19 = arith.constant 0 : index
    %24 = vector.load %arg8[%c0_18, %c0_19] : memref<16x128xf32, #tpu.memory_space<vmem>>, vector<16x128xf32>
    tpu.vector_store %arg8[%c0_18, %c0_19], %23 {strides = array<i32>} : memref<16x128xf32, #tpu.memory_space<vmem>>, vector<16x128xf32>,
    return
  }
  func.func @transform_0(%arg0: i32) -> (i32, i32) {
    %c0_i32 = arith.constant 0 : i32
    %c0_i32_0 = arith.constant 0 : i32
    return %arg0, %c0_i32 : i32, i32
  }
  func.func @transform_1(%arg0: i32) -> (i32, i32) {
    %c0_i32 = arith.constant 0 : i32
    %c0_i32_0 = arith.constant 0 : i32
    %c0_i32_1 = arith.constant 0 : i32
    return %c0_i32, %c0_i32_0 : i32, i32
  }
  func.func @transform_2(%arg0: i32) -> (i32, i32) {
    %c0_i32 = arith.constant 0 : i32
    %c0_i32_0 = arith.constant 0 : i32
    %c0_i32_1 = arith.constant 0 : i32
    return %c0_i32, %c0_i32_0 : i32, i32
  }
  func.func @transform_3(%arg0: i32) -> (i32, i32) {
    %c0_i32 = arith.constant 0 : i32
    %c0_i32_0 = arith.constant 0 : i32
    %c0_i32_1 = arith.constant 0 : i32
    return %c0_i32, %c0_i32_0 : i32, i32
  }
  func.func @transform_4(%arg0: i32) -> (i32, i32) {
    %c0_i32 = arith.constant 0 : i32
    %c0_i32_0 = arith.constant 0 : i32
    %c0_i32_1 = arith.constant 0 : i32
    return %c0_i32, %c0_i32_0 : i32, i32
  }
  func.func @transform_5(%arg0: i32) -> (i32, i32) {
    %c0_i32 = arith.constant 0 : i32
    %c0_i32_0 = arith.constant 0 : i32
    %c0_i32_1 = arith.constant 0 : i32
    return %c0_i32, %c0_i32_0 : i32, i32
  }
  func.func @transform_6(%arg0: i32) -> (i32, i32) {
    %c0_i32 = arith.constant 0 : i32
    %c0_i32_0 = arith.constant 0 : i32
    %c0_i32_1 = arith.constant 0 : i32
    return %c0_i32, %c0_i32_0 : i32, i32
  }
  func.func @transform_7(%arg0: i32) -> (i32, i32) {
    %c0_i32 = arith.constant 0 : i32
    %c0_i32_0 = arith.constant 0 : i32
    return %arg0, %c0_i32 : i32, i32
  }
}

</mosaic_0001>

<llo_original>
// kernel: _lambda_.1
$region0: #{_lambda_.1}
  #allocation0 [shape = 'u32[]', space=smem, size = 0x4, offset = 0x4, fixed_abs, tag = 'smem constant byte address 0x4 - core index']
  #allocation1 [shape = 'u32[144,128]{1,0:T(1,128)}', space=vmem, size = 0x12000, scoped, tag = 'internal scratch']
  %s0 = inlined_call_operand.vmem [shape: bf16[32,128], index: 0, kind: input, shape index: {}]
  %s1 = inlined_call_operand.hbm [shape: bf16[128,128], index: 1, kind: input, shape index: {}]
  %s2 = inlined_call_operand.vmem [shape: f32[1,128], index: 2, kind: input, shape index: {}]
  %s3 = inlined_call_operand.hbm [shape: bf16[128,128], index: 3, kind: input, shape index: {}]
  %s4 = inlined_call_operand.vmem [shape: f32[1,128], index: 4, kind: input, shape index: {}]
  %s5 = inlined_call_operand.hbm [shape: bf16[128,128], index: 5, kind: input, shape index: {}]
  %s6 = inlined_call_operand.vmem [shape: f32[1,128], index: 6, kind: input, shape index: {}]
  %s7 = inlined_call_operand.vmem [shape: f32[32,128], index: 7, kind: output, shape index: {}]
  %s8 = sld [smem:[#allocation0]]
  $region73: #{_lambda_.1} parent=0
    _
  %s10 = ssub.s32 1, %s8
  %s11 = scalar_select 0, %s10, %s8
  $region1: #{_lambda_.1} parent=0
    #allocation2 [shape = 'u8[32768]{0}', space=vmem, size = 0x8000, scoped, tag = 'input window, operand 1, single buffered']
    #allocation3 [shape = 's32[2]{0}', space=sflag, size = 0x8, scoped, tag = 'scoped memory for _lambda_.1']
    #allocation4 [shape = 'u8[32768]{0}', space=vmem, size = 0x8000, scoped, tag = 'input window, operand 3, single buffered']
    #allocation5 [shape = 's32[1]{0}', space=sflag, size = 0x4, scoped, tag = 'scoped memory for _lambda_.1']
    #allocation6 [shape = 'u8[32768]{0}', space=vmem, size = 0x8000, scoped, tag = 'input window, operand 5, single buffered']
    %12 = vsyncpa [#allocation3], 0
    %13 = vsyncpa [#allocation5], 0
    loop: start=0, step=1, limit=4
    $region2: #{_lambda_.1} parent=1 // loop_pre_header
      _
    $region3: #{_lambda_.1} parent=1 // loop_header
      %s15 = sphi 0, %s19
      %p16 = scmp.ge.s32.totalorder %s15, 4
      %s25 = sphi 0, %s27
      %s28 = sphi 0, %s25
      %s29 = sphi 0, %s28
      %s45 = sphi 0, %s29
      %s49 = sphi 0, %s49
      %s51 = sphi 0, %s49
      %s52 = sphi 0, %s51
      %s66 = sphi 0, %s52
      %s70 = sphi 0, %s70
      %s72 = sphi 0, %s70
      %s73 = sphi 0, %s72
      %s87 = sphi 0, %s73
      %s91 = sphi 0, %s91
      %s93 = sphi 0, %s91
      %s94 = sphi 0, %s93
      %s108 = sphi 0, %s94
      %s112 = sphi 0, %s112
      %s114 = sphi 0, %s112
      %s115 = sphi 0, %s114
      %s129 = sphi 0, %s115
      %s133 = sphi 0, %s133
      %s135 = sphi 0, %s133
      %s136 = sphi 0, %s135
      %s150 = sphi 0, %s136
      %s154 = sphi 0, %s154
      %s156 = sphi 0, %s154
      %s157 = sphi 0, %s156
      %s171 = sphi 0, %s157
      %s177 = sphi 0, %s179
      %s180 = sphi 0, %s177
      %s181 = sphi 0, %s180
      %s197 = sphi 0, %s181
    $region4: #{_lambda_.1} parent=1 // loop_header_branch
      %18 = sbr.rel (%p16) target = $region8
    $region5: #{_lambda_.1} parent=1 // loop_body
      %s20 = ssub.s32 %s15, 1
      %s21 = ssub.s32 %s15, 2
      %s22 = sadd.s32 %s15, 1
      %s23 = ssub.s32 %s15, %s22
      %p24 = scmp.eq.s32.totalorder %s23, 0
      %s26 = sadd.s32 %s25, 1
      %s27 = scalar_select %p24, %s25, %s26
      %p30 = pneg %p24
      %p31 = scmp.eq.s32.totalorder %s15, 1
      %p32 = por %p30, %p31
      %p33 = scmp.ne.s32.totalorder %s25, %s28
      %p34 = scmp.eq.s32.totalorder %s15, 0
      %p35 = por %p33, %p34
      %p36 = scmp.ne.s32.totalorder %s25, %s28
      %p37 = scmp.eq.s32.totalorder %s20, 1
      %p38 = por %p36, %p37
      %p39 = scmp.ne.s32.totalorder %s28, %s29
      %p40 = scmp.eq.s32.totalorder %s20, 0
      %p41 = por %p39, %p40
      %p42 = scmp.ne.s32.totalorder %s28, %s29
      %p43 = scmp.eq.s32.totalorder %s21, 1
      %p44 = por %p42, %p43
      %p46 = scmp.ne.s32.totalorder %s29, %s45
      %p47 = scmp.eq.s32.totalorder %s21, 0
      %p48 = por %p46, %p47
      %s50 = sadd.s32 %s49, 1
      %p53 = scmp.eq.s32.totalorder %s15, 1
      %p54 = scmp.ne.s32.totalorder %s49, %s51
      %p55 = scmp.eq.s32.totalorder %s15, 0
      %p56 = por %p54, %p55
      %p57 = scmp.ne.s32.totalorder %s49, %s51
      %p58 = scmp.eq.s32.totalorder %s20, 1
      %p59 = por %p57, %p58
      %p60 = scmp.ne.s32.totalorder %s51, %s52
      %p61 = scmp.eq.s32.totalorder %s20, 0
      %p62 = por %p60, %p61
      %p63 = scmp.ne.s32.totalorder %s51, %s52
      %p64 = scmp.eq.s32.totalorder %s21, 1
      %p65 = por %p63, %p64
      %p67 = scmp.ne.s32.totalorder %s52, %s66
      %p68 = scmp.eq.s32.totalorder %s21, 0
      %p69 = por %p67, %p68
      %s71 = sadd.s32 %s70, 1
      %p74 = scmp.eq.s32.totalorder %s15, 1
      %p75 = scmp.ne.s32.totalorder %s70, %s72
      %p76 = scmp.eq.s32.totalorder %s15, 0
      %p77 = por %p75, %p76
      %p78 = scmp.ne.s32.totalorder %s70, %s72
      %p79 = scmp.eq.s32.totalorder %s20, 1
      %p80 = por %p78, %p79
      %p81 = scmp.ne.s32.totalorder %s72, %s73
      %p82 = scmp.eq.s32.totalorder %s20, 0
      %p83 = por %p81, %p82
      %p84 = scmp.ne.s32.totalorder %s72, %s73
      %p85 = scmp.eq.s32.totalorder %s21, 1
      %p86 = por %p84, %p85
      %p88 = scmp.ne.s32.totalorder %s73, %s87
      %p89 = scmp.eq.s32.totalorder %s21, 0
      %p90 = por %p88, %p89
      %s92 = sadd.s32 %s91, 1
      %p95 = scmp.eq.s32.totalorder %s15, 1
      %p96 = scmp.ne.s32.totalorder %s91, %s93
      %p97 = scmp.eq.s32.totalorder %s15, 0
      %p98 = por %p96, %p97
      %p99 = scmp.ne.s32.totalorder %s91, %s93
      %p100 = scmp.eq.s32.totalorder %s20, 1
      %p101 = por %p99, %p100
      %p102 = scmp.ne.s32.totalorder %s93, %s94
      %p103 = scmp.eq.s32.totalorder %s20, 0
      %p104 = por %p102, %p103
      %p105 = scmp.ne.s32.totalorder %s93, %s94
      %p106 = scmp.eq.s32.totalorder %s21, 1
      %p107 = por %p105, %p106
      %p109 = scmp.ne.s32.totalorder %s94, %s108
      %p110 = scmp.eq.s32.totalorder %s21, 0
      %p111 = por %p109, %p110
      %s113 = sadd.s32 %s112, 1
      %p116 = scmp.eq.s32.totalorder %s15, 1
      %p117 = scmp.ne.s32.totalorder %s112, %s114
      %p118 = scmp.eq.s32.totalorder %s15, 0
      %p119 = por %p117, %p118
      %p120 = scmp.ne.s32.totalorder %s112, %s114
      %p121 = scmp.eq.s32.totalorder %s20, 1
      %p122 = por %p120, %p121
      %p123 = scmp.ne.s32.totalorder %s114, %s115
      %p124 = scmp.eq.s32.totalorder %s20, 0
      %p125 = por %p123, %p124
      %p126 = scmp.ne.s32.totalorder %s114, %s115
      %p127 = scmp.eq.s32.totalorder %s21, 1
      %p128 = por %p126, %p127
      %p130 = scmp.ne.s32.totalorder %s115, %s129
      %p131 = scmp.eq.s32.totalorder %s21, 0
      %p132 = por %p130, %p131
      %s134 = sadd.s32 %s133, 1
      %p137 = scmp.eq.s32.totalorder %s15, 1
      %p138 = scmp.ne.s32.totalorder %s133, %s135
      %p139 = scmp.eq.s32.totalorder %s15, 0
      %p140 = por %p138, %p139
      %p141 = scmp.ne.s32.totalorder %s133, %s135
      %p142 = scmp.eq.s32.totalorder %s20, 1
      %p143 = por %p141, %p142
      %p144 = scmp.ne.s32.totalorder %s135, %s136
      %p145 = scmp.eq.s32.totalorder %s20, 0
      %p146 = por %p144, %p145
      %p147 = scmp.ne.s32.totalorder %s135, %s136
      %p148 = scmp.eq.s32.totalorder %s21, 1
      %p149 = por %p147, %p148
      %p151 = scmp.ne.s32.totalorder %s136, %s150
      %p152 = scmp.eq.s32.totalorder %s21, 0
      %p153 = por %p151, %p152
      %s155 = sadd.s32 %s154, 1
      %p158 = scmp.eq.s32.totalorder %s15, 1
      %p159 = scmp.ne.s32.totalorder %s154, %s156
      %p160 = scmp.eq.s32.totalorder %s15, 0
      %p161 = por %p159, %p160
      %p162 = scmp.ne.s32.totalorder %s154, %s156
      %p163 = scmp.eq.s32.totalorder %s20, 1
      %p164 = por %p162, %p163
      %p165 = scmp.ne.s32.totalorder %s156, %s157
      %p166 = scmp.eq.s32.totalorder %s20, 0
      %p167 = por %p165, %p166
      %p168 = scmp.ne.s32.totalorder %s156, %s157
      %p169 = scmp.eq.s32.totalorder %s21, 1
      %p170 = por %p168, %p169
      %p172 = scmp.ne.s32.totalorder %s157, %s171
      %p173 = scmp.eq.s32.totalorder %s21, 0
      %p174 = por %p172, %p173
      %s175 = ssub.s32 %s15, %s22
      %p176 = scmp.eq.s32.totalorder %s175, 0
      %s178 = sadd.s32 %s177, 1
      %s179 = scalar_select %p176, %s177, %s178
      %p182 = pneg %p176
      %p183 = scmp.eq.s32.totalorder %s15, 1
      %p184 = por %p182, %p183
      %p185 = scmp.ne.s32.totalorder %s177, %s180
      %p186 = scmp.eq.s32.totalorder %s15, 0
      %p187 = por %p185, %p186
      %p188 = scmp.ne.s32.totalorder %s177, %s180
      %p189 = scmp.eq.s32.totalorder %s20, 1
      %p190 = por %p188, %p189
      %p191 = scmp.ne.s32.totalorder %s180, %s181
      %p192 = scmp.eq.s32.totalorder %s20, 0
      %p193 = por %p191, %p192
      %p194 = scmp.ne.s32.totalorder %s180, %s181
      %p195 = scmp.eq.s32.totalorder %s21, 1
      %p196 = por %p194, %p195
      %p198 = scmp.ne.s32.totalorder %s181, %s197
      %p199 = scmp.eq.s32.totalorder %s21, 0
      %p200 = por %p198, %p199
      %p201 = scmp.le.s32.totalorder 1, %s15
      %p202 = scmp.lt.s32.totalorder %s15, 3
      %p203 = pnand %p201, %p202
      %p204 = pneg %p203
      // Predicated region
      $region9: #{_lambda_.1} parent=5 // pred_check
        _
      $region10: #{_lambda_.1} parent=5 // pred_check_branch
        %206 = sbr.rel (%p203) target = $region12
      $region11: #{_lambda_.1} parent=5 // pred_region
        %s207 = ssub.s32 %s15, 1
        // Predicated region
        $region13: #{_lambda_.1} parent=11 // pred_check
          %p208 = pneg %p62
        $region14: #{_lambda_.1} parent=11 // pred_check_branch
          %210 = sbr.rel (%p208) target = $region16
        $region15: #{_lambda_.1} parent=11 // pred_region
          %s212 = ssub.s32 1024, 1024
          %213 = vsyncadd [#allocation3], %s212
          %s214 = sshll.u32 [#allocation2], 4
          %s215 = int_to_ptr.vmem [resolvable:$true] %s214
          %220 = dma.hbm_to_vmem [thread:$0]  %s1, 1024, %s215, [#allocation3], 64, 64, 4
        $region16: #{_lambda_.1} parent=11 // pred_fallthru
          _
        // Predicated region
        $region17: #{_lambda_.1} parent=11 // pred_check
          %p221 = pneg %p83
        $region18: #{_lambda_.1} parent=11 // pred_check_branch
          %223 = sbr.rel (%p221) target = $region20
        $region19: #{_lambda_.1} parent=11 // pred_region
          _
        $region20: #{_lambda_.1} parent=11 // pred_fallthru
          _
        // Predicated region
        $region21: #{_lambda_.1} parent=11 // pred_check
          %p224 = pneg %p104
        $region22: #{_lambda_.1} parent=11 // pred_check_branch
          %226 = sbr.rel (%p224) target = $region24
        $region23: #{_lambda_.1} parent=11 // pred_region
          %s228 = ssub.s32 1024, 1024
          %229 = vsyncadd [#allocation5], %s228
          %s230 = sshll.u32 [#allocation4], 4
          %s231 = int_to_ptr.vmem [resolvable:$true] %s230
          %236 = dma.hbm_to_vmem [thread:$0]  %s3, 1024, %s231, [#allocation5], 64, 64, 4
        $region24: #{_lambda_.1} parent=11 // pred_fallthru
          _
        // Predicated region
        $region25: #{_lambda_.1} parent=11 // pred_check
          %p237 = pneg %p125
        $region26: #{_lambda_.1} parent=11 // pred_check_branch
          %239 = sbr.rel (%p237) target = $region28
        $region27: #{_lambda_.1} parent=11 // pred_region
          _
        $region28: #{_lambda_.1} parent=11 // pred_fallthru
          _
        // Predicated region
        $region29: #{_lambda_.1} parent=11 // pred_check
          %p240 = pneg %p146
        $region30: #{_lambda_.1} parent=11 // pred_check_branch
          %242 = sbr.rel (%p240) target = $region32
        $region31: #{_lambda_.1} parent=11 // pred_region
          %s244 = ssub.s32 1024, 1024
          %245 = vsyncadd [#allocation5], %s244
          %s246 = sshll.u32 [#allocation6], 4
          %s247 = int_to_ptr.vmem [resolvable:$true] %s246
          %252 = dma.hbm_to_vmem [thread:$0]  %s5, 1024, %s247, [#allocation5], 64, 64, 4
        $region32: #{_lambda_.1} parent=11 // pred_fallthru
          _
        // Predicated region
        $region33: #{_lambda_.1} parent=11 // pred_check
          %p253 = pneg %p167
        $region34: #{_lambda_.1} parent=11 // pred_check_branch
          %255 = sbr.rel (%p253) target = $region36
        $region35: #{_lambda_.1} parent=11 // pred_region
          _
        $region36: #{_lambda_.1} parent=11 // pred_fallthru
          _
      $region12: #{_lambda_.1} parent=5 // pred_fallthru
        _
      %p256 = scmp.lt.s32.totalorder %s15, 2
      // Predicated region
      $region37: #{_lambda_.1} parent=5 // pred_check
        %p257 = pneg %p256
      $region38: #{_lambda_.1} parent=5 // pred_check_branch
        %259 = sbr.rel (%p257) target = $region40
      $region39: #{_lambda_.1} parent=5 // pred_region
        // Predicated region
        $region41: #{_lambda_.1} parent=39 // pred_check
          %p260 = pneg %p35
        $region42: #{_lambda_.1} parent=39 // pred_check_branch
          %262 = sbr.rel (%p260) target = $region44
        $region43: #{_lambda_.1} parent=39 // pred_region
          %s263 = smul.u32 2, %s15
          %p264 = scmp.lt.s32.totalorder %s263, 3
          %s265 = scalar_select %p264, %s263, 3
          %s266 = smul.addr %s265, 4
          %s267 = scalar_lea.vmem %s0, %s266
          %s268 = smul.u32 2, %s15
        $region44: #{_lambda_.1} parent=39 // pred_fallthru
          _
      $region40: #{_lambda_.1} parent=5 // pred_fallthru
        _
      %p269 = scmp.le.s32.totalorder 1, %s15
      %p270 = scmp.lt.s32.totalorder %s15, 3
      %p271 = pnand %p269, %p270
      %p272 = pneg %p271
      // Predicated region
      $region45: #{_lambda_.1} parent=5 // pred_check
        _
      $region46: #{_lambda_.1} parent=5 // pred_check_branch
        %274 = sbr.rel (%p271) target = $region48
      $region47: #{_lambda_.1} parent=5 // pred_region
        %s275 = ssub.s32 %s15, 1
        // Predicated region
        $region49: #{_lambda_.1} parent=47 // pred_check
          %p276 = pneg %p62
        $region50: #{_lambda_.1} parent=47 // pred_check_branch
          %278 = sbr.rel (%p276) target = $region52
        $region51: #{_lambda_.1} parent=47 // pred_region
          %279 = dma.done [#allocation3], 1024
        $region52: #{_lambda_.1} parent=47 // pred_fallthru
          _
        // Predicated region
        $region53: #{_lambda_.1} parent=47 // pred_check
          %p280 = pneg %p104
        $region54: #{_lambda_.1} parent=47 // pred_check_branch
          %282 = sbr.rel (%p280) target = $region56
        $region55: #{_lambda_.1} parent=47 // pred_region
          %283 = dma.done [#allocation5], 1024
        $region56: #{_lambda_.1} parent=47 // pred_fallthru
          _
        // Predicated region
        $region57: #{_lambda_.1} parent=47 // pred_check
          %p284 = pneg %p146
        $region58: #{_lambda_.1} parent=47 // pred_check_branch
          %286 = sbr.rel (%p284) target = $region60
        $region59: #{_lambda_.1} parent=47 // pred_region
          %287 = dma.done [#allocation5], 1024
        $region60: #{_lambda_.1} parent=47 // pred_fallthru
          _
        %s288 = smul.u32 2, %s20
        %p289 = scmp.lt.s32.totalorder %s288, 3
        %s290 = scalar_select %p289, %s288, 3
        %s291 = smul.addr %s290, 4
        %s292 = scalar_lea.vmem %s0, %s291
        %p293 = pneg %p41
        %p294 = pneg %p38
        %p295 = pneg %p62
        %p296 = pneg %p59
        %p297 = pneg %p83
        %p298 = pneg %p80
        %p299 = pneg %p104
        %p300 = pneg %p101
        %p301 = pneg %p125
        %p302 = pneg %p122
        %p303 = pneg %p146
        %p304 = pneg %p143
        %p305 = pneg %p167
        %p306 = pneg %p164
        %p307 = pneg %p193
        %p308 = pneg %p190
        %s309 = smul.u32 2, %s20
        %p310 = scmp.lt.s32.totalorder %s309, 3
        %s311 = scalar_select %p310, %s309, 3
        %s312 = smul.addr %s311, 8
        %s313 = scalar_lea.vmem %s7, %s312
        %s314 = smul.u32 2, %s20
        %p315 = scmp.lt.s32.totalorder %s314, 3
        %s316 = scalar_select %p315, %s314, 3
        %s317 = smul.addr %s316, 4
        %s318 = scalar_lea.vmem %s0, %s317
        %s319 = smul.u32 2, %s20
        %s320 = smul.u32 2, %s20
        %p321 = scmp.lt.s32.totalorder %s320, 3
        %s322 = scalar_select %p321, %s320, 3
        %s323 = smul.addr %s322, 8
        %s324 = scalar_lea.vmem %s7, %s323
        %s325 = smul.u32 2, %s20
        %v327 = vld [vmem:[%s318] sm:$0xf]
        %v328 = vld [vmem:[%s318 + $0x4] sm:$0xf]
        %v329 = vld [vmem:[#allocation2] sm:$0xf]
        %v330 = vld [vmem:[#allocation2 + $0x4] sm:$0xf]
        %v331 = vld [vmem:[#allocation2 + $0x8] sm:$0xf]
        %v332 = vld [vmem:[#allocation2 + $0xc] sm:$0xf]
        %v333 = vld [vmem:[#allocation2 + $0x10] sm:$0xf]
        %v334 = vld [vmem:[#allocation2 + $0x14] sm:$0xf]
        %v335 = vld [vmem:[#allocation2 + $0x18] sm:$0xf]
        %v336 = vld [vmem:[#allocation2 + $0x1c] sm:$0xf]
        %v337 = vld [vmem:[#allocation2 + $0x20] sm:$0xf]
        %v338 = vld [vmem:[#allocation2 + $0x24] sm:$0xf]
        %v339 = vld [vmem:[#allocation2 + $0x28] sm:$0xf]
        %v340 = vld [vmem:[#allocation2 + $0x2c] sm:$0xf]
        %v341 = vld [vmem:[#allocation2 + $0x30] sm:$0xf]
        %v342 = vld [vmem:[#allocation2 + $0x34] sm:$0xf]
        %v343 = vld [vmem:[#allocation2 + $0x38] sm:$0xf]
        %v344 = vld [vmem:[#allocation2 + $0x3c] sm:$0xf]
        %v345 = vld [vmem:[%s2] sm:$0x1]
        %v347 = vlaneseq
        %v348 = vshrl.u32 %v347, 7
        %v349 = vsub.s32 0, %v348
        %v350 = vrot.slane %v345, %v349
        %v354 = vunpack.c.l.b16 %v327
        %v355 = vunpack.c.l.b16 %v328
        %v356 = vpack.c.b16 %v355, %v354
        %v374 = vunpack.c.l.b16 %v329
        %v375 = vunpack.c.l.b16 %v330
        %v376 = vunpack.c.l.b16 %v331
        %v377 = vunpack.c.l.b16 %v332
        %v378 = vunpack.c.l.b16 %v333
        %v379 = vunpack.c.l.b16 %v334
        %v380 = vunpack.c.l.b16 %v335
        %v381 = vunpack.c.l.b16 %v336
        %v382 = vunpack.c.l.b16 %v337
        %v383 = vunpack.c.l.b16 %v338
        %v384 = vunpack.c.l.b16 %v339
        %v385 = vunpack.c.l.b16 %v340
        %v386 = vunpack.c.l.b16 %v341
        %v387 = vunpack.c.l.b16 %v342
        %v388 = vunpack.c.l.b16 %v343
        %v389 = vunpack.c.l.b16 %v344
        %v390 = vpack.c.b16 %v375, %v374
        %v391 = vpack.c.b16 %v377, %v376
        %v392 = vpack.c.b16 %v379, %v378
        %v393 = vpack.c.b16 %v381, %v380
        %v394 = vpack.c.b16 %v383, %v382
        %v395 = vpack.c.b16 %v385, %v384
        %v396 = vpack.c.b16 %v387, %v386
        %v397 = vpack.c.b16 %v389, %v388
        %406 = vmatprep.subr.bf16.mxu0 0
        %407 = vmatpush1.bf16.msra.mxu0 %v390
        %408 = vmatprep.subr.bf16.mxu0 0
        %409 = vmatpush1.bf16.msra.mxu0 %v391
        %410 = vmatprep.subr.bf16.mxu0 0
        %411 = vmatpush1.bf16.msra.mxu0 %v392
        %412 = vmatprep.subr.bf16.mxu0 0
        %413 = vmatpush1.bf16.msra.mxu0 %v393
        %414 = vmatprep.subr.bf16.mxu0 0
        %415 = vmatpush1.bf16.msra.mxu0 %v394
        %416 = vmatprep.subr.bf16.mxu0 0
        %417 = vmatpush1.bf16.msra.mxu0 %v395
        %418 = vmatprep.subr.bf16.mxu0 0
        %419 = vmatpush1.bf16.msra.mxu0 %v396
        %420 = vmatprep.subr.bf16.mxu0 0
        %421 = vmatpush1.bf16.msra.mxu0 %v397
        %422 = vmatprep.subr.bf16.mxu0 0
        %423 = vmatpush1.bf16.msra.mxu0 0
        %424 = vmatprep.subr.bf16.mxu0 0
        %425 = vmatpush1.bf16.msra.mxu0 0
        %426 = vmatprep.subr.bf16.mxu0 0
        %427 = vmatpush1.bf16.msra.mxu0 0
        %428 = vmatprep.subr.bf16.mxu0 0
        %429 = vmatpush1.bf16.msra.mxu0 0
        %430 = vmatprep.subr.bf16.mxu0 0
        %431 = vmatpush1.bf16.msra.mxu0 0
        %432 = vmatprep.subr.bf16.mxu0 0
        %433 = vmatpush1.bf16.msra.mxu0 0
        %434 = vmatprep.subr.bf16.mxu0 0
        %435 = vmatpush1.bf16.msra.mxu0 0
        %436 = vmatprep.subr.bf16.mxu0 0
        %437 = vmatpush1.bf16.msra.mxu0 0
        %438 = vmatprep.mubr.bf16.mxu0 0
        %439 = vmatmul.mubr.bf16.gmra.mrb[0].mxu0 %v356
        %v440 = vpop.f32.mrb[0].mxu0
        %v441 = vadd.f32 %v350, %v440
        %v442 = vpop.f32.mrb[0].mxu0
        %v443 = vpop.f32.mrb[0].mxu0
        %v444 = vadd.f32 %v350, %v443
        %v445 = vpop.f32.mrb[0].mxu0
        %446 = vdwg.mxu0
        %v447 = vmax.f32 %v441, 0.0
        %v448 = vmax.f32 %v444, 0.0
        %v449 = vpack.c.bf16 %v448, %v447
        %v450 = vld [vmem:[#allocation4] sm:$0xf]
        %v451 = vld [vmem:[#allocation4 + $0x4] sm:$0xf]
        %v452 = vld [vmem:[#allocation4 + $0x8] sm:$0xf]
        %v453 = vld [vmem:[#allocation4 + $0xc] sm:$0xf]
        %v454 = vld [vmem:[#allocation4 + $0x10] sm:$0xf]
        %v455 = vld [vmem:[#allocation4 + $0x14] sm:$0xf]
        %v456 = vld [vmem:[#allocation4 + $0x18] sm:$0xf]
        %v457 = vld [vmem:[#allocation4 + $0x1c] sm:$0xf]
        %v458 = vld [vmem:[#allocation4 + $0x20] sm:$0xf]
        %v459 = vld [vmem:[#allocation4 + $0x24] sm:$0xf]
        %v460 = vld [vmem:[#allocation4 + $0x28] sm:$0xf]
        %v461 = vld [vmem:[#allocation4 + $0x2c] sm:$0xf]
        %v462 = vld [vmem:[#allocation4 + $0x30] sm:$0xf]
        %v463 = vld [vmem:[#allocation4 + $0x34] sm:$0xf]
        %v464 = vld [vmem:[#allocation4 + $0x38] sm:$0xf]
        %v465 = vld [vmem:[#allocation4 + $0x3c] sm:$0xf]
        %v466 = vld [vmem:[%s4] sm:$0x1]
        %v468 = vlaneseq
        %v469 = vshrl.u32 %v468, 7
        %v470 = vsub.s32 0, %v469
        %v471 = vrot.slane %v466, %v470
        %v489 = vunpack.c.l.b16 %v450
        %v490 = vunpack.c.l.b16 %v451
        %v491 = vunpack.c.l.b16 %v452
        %v492 = vunpack.c.l.b16 %v453
        %v493 = vunpack.c.l.b16 %v454
        %v494 = vunpack.c.l.b16 %v455
        %v495 = vunpack.c.l.b16 %v456
        %v496 = vunpack.c.l.b16 %v457
        %v497 = vunpack.c.l.b16 %v458
        %v498 = vunpack.c.l.b16 %v459
        %v499 = vunpack.c.l.b16 %v460
        %v500 = vunpack.c.l.b16 %v461
        %v501 = vunpack.c.l.b16 %v462
        %v502 = vunpack.c.l.b16 %v463
        %v503 = vunpack.c.l.b16 %v464
        %v504 = vunpack.c.l.b16 %v465
        %v505 = vpack.c.b16 %v490, %v489
        %v506 = vpack.c.b16 %v492, %v491
        %v507 = vpack.c.b16 %v494, %v493
        %v508 = vpack.c.b16 %v496, %v495
        %v509 = vpack.c.b16 %v498, %v497
        %v510 = vpack.c.b16 %v500, %v499
        %v511 = vpack.c.b16 %v502, %v501
        %v512 = vpack.c.b16 %v504, %v503
        %521 = vmatprep.subr.bf16.mxu0 0
        %522 = vmatpush1.bf16.msra.mxu0 %v505
        %523 = vmatprep.subr.bf16.mxu0 0
        %524 = vmatpush1.bf16.msra.mxu0 %v506
        %525 = vmatprep.subr.bf16.mxu0 0
        %526 = vmatpush1.bf16.msra.mxu0 %v507
        %527 = vmatprep.subr.bf16.mxu0 0
        %528 = vmatpush1.bf16.msra.mxu0 %v508
        %529 = vmatprep.subr.bf16.mxu0 0
        %530 = vmatpush1.bf16.msra.mxu0 %v509
        %531 = vmatprep.subr.bf16.mxu0 0
        %532 = vmatpush1.bf16.msra.mxu0 %v510
        %533 = vmatprep.subr.bf16.mxu0 0
        %534 = vmatpush1.bf16.msra.mxu0 %v511
        %535 = vmatprep.subr.bf16.mxu0 0
        %536 = vmatpush1.bf16.msra.mxu0 %v512
        %537 = vmatprep.subr.bf16.mxu0 0
        %538 = vmatpush1.bf16.msra.mxu0 0
        %539 = vmatprep.subr.bf16.mxu0 0
        %540 = vmatpush1.bf16.msra.mxu0 0
        %541 = vmatprep.subr.bf16.mxu0 0
        %542 = vmatpush1.bf16.msra.mxu0 0
        %543 = vmatprep.subr.bf16.mxu0 0
        %544 = vmatpush1.bf16.msra.mxu0 0
        %545 = vmatprep.subr.bf16.mxu0 0
        %546 = vmatpush1.bf16.msra.mxu0 0
        %547 = vmatprep.subr.bf16.mxu0 0
        %548 = vmatpush1.bf16.msra.mxu0 0
        %549 = vmatprep.subr.bf16.mxu0 0
        %550 = vmatpush1.bf16.msra.mxu0 0
        %551 = vmatprep.subr.bf16.mxu0 0
        %552 = vmatpush1.bf16.msra.mxu0 0
        %553 = vmatprep.mubr.bf16.mxu0 0
        %554 = vmatmul.mubr.bf16.gmra.mrb[0].mxu0 %v449
        %v555 = vpop.f32.mrb[0].mxu0
        %v556 = vadd.f32 %v471, %v555
        %v557 = vpop.f32.mrb[0].mxu0
        %v558 = vpop.f32.mrb[0].mxu0
        %v559 = vadd.f32 %v471, %v558
        %v560 = vpop.f32.mrb[0].mxu0
        %561 = vdwg.mxu0
        %v562 = vmax.f32 %v556, 0.0
        %v563 = vmax.f32 %v559, 0.0
        %v564 = vpack.c.bf16 %v563, %v562
        %v565 = vld [vmem:[#allocation6] sm:$0xf]
        %v566 = vld [vmem:[#allocation6 + $0x4] sm:$0xf]
        %v567 = vld [vmem:[#allocation6 + $0x8] sm:$0xf]
        %v568 = vld [vmem:[#allocation6 + $0xc] sm:$0xf]
        %v569 = vld [vmem:[#allocation6 + $0x10] sm:$0xf]
        %v570 = vld [vmem:[#allocation6 + $0x14] sm:$0xf]
        %v571 = vld [vmem:[#allocation6 + $0x18] sm:$0xf]
        %v572 = vld [vmem:[#allocation6 + $0x1c] sm:$0xf]
        %v573 = vld [vmem:[#allocation6 + $0x20] sm:$0xf]
        %v574 = vld [vmem:[#allocation6 + $0x24] sm:$0xf]
        %v575 = vld [vmem:[#allocation6 + $0x28] sm:$0xf]
        %v576 = vld [vmem:[#allocation6 + $0x2c] sm:$0xf]
        %v577 = vld [vmem:[#allocation6 + $0x30] sm:$0xf]
        %v578 = vld [vmem:[#allocation6 + $0x34] sm:$0xf]
        %v579 = vld [vmem:[#allocation6 + $0x38] sm:$0xf]
        %v580 = vld [vmem:[#allocation6 + $0x3c] sm:$0xf]
        %v581 = vld [vmem:[%s6] sm:$0x1]
        %v583 = vlaneseq
        %v584 = vshrl.u32 %v583, 7
        %v585 = vsub.s32 0, %v584
        %v586 = vrot.slane %v581, %v585
        %v604 = vunpack.c.l.b16 %v565
        %v605 = vunpack.c.l.b16 %v566
        %v606 = vunpack.c.l.b16 %v567
        %v607 = vunpack.c.l.b16 %v568
        %v608 = vunpack.c.l.b16 %v569
        %v609 = vunpack.c.l.b16 %v570
        %v610 = vunpack.c.l.b16 %v571
        %v611 = vunpack.c.l.b16 %v572
        %v612 = vunpack.c.l.b16 %v573
        %v613 = vunpack.c.l.b16 %v574
        %v614 = vunpack.c.l.b16 %v575
        %v615 = vunpack.c.l.b16 %v576
        %v616 = vunpack.c.l.b16 %v577
        %v617 = vunpack.c.l.b16 %v578
        %v618 = vunpack.c.l.b16 %v579
        %v619 = vunpack.c.l.b16 %v580
        %v620 = vpack.c.b16 %v605, %v604
        %v621 = vpack.c.b16 %v607, %v606
        %v622 = vpack.c.b16 %v609, %v608
        %v623 = vpack.c.b16 %v611, %v610
        %v624 = vpack.c.b16 %v613, %v612
        %v625 = vpack.c.b16 %v615, %v614
        %v626 = vpack.c.b16 %v617, %v616
        %v627 = vpack.c.b16 %v619, %v618
        %636 = vmatprep.subr.bf16.mxu0 0
        %637 = vmatpush1.bf16.msra.mxu0 %v620
        %638 = vmatprep.subr.bf16.mxu0 0
        %639 = vmatpush1.bf16.msra.mxu0 %v621
        %640 = vmatprep.subr.bf16.mxu0 0
        %641 = vmatpush1.bf16.msra.mxu0 %v622
        %642 = vmatprep.subr.bf16.mxu0 0
        %643 = vmatpush1.bf16.msra.mxu0 %v623
        %644 = vmatprep.subr.bf16.mxu0 0
        %645 = vmatpush1.bf16.msra.mxu0 %v624
        %646 = vmatprep.subr.bf16.mxu0 0
        %647 = vmatpush1.bf16.msra.mxu0 %v625
        %648 = vmatprep.subr.bf16.mxu0 0
        %649 = vmatpush1.bf16.msra.mxu0 %v626
        %650 = vmatprep.subr.bf16.mxu0 0
        %651 = vmatpush1.bf16.msra.mxu0 %v627
        %652 = vmatprep.subr.bf16.mxu0 0
        %653 = vmatpush1.bf16.msra.mxu0 0
        %654 = vmatprep.subr.bf16.mxu0 0
        %655 = vmatpush1.bf16.msra.mxu0 0
        %656 = vmatprep.subr.bf16.mxu0 0
        %657 = vmatpush1.bf16.msra.mxu0 0
        %658 = vmatprep.subr.bf16.mxu0 0
        %659 = vmatpush1.bf16.msra.mxu0 0
        %660 = vmatprep.subr.bf16.mxu0 0
        %661 = vmatpush1.bf16.msra.mxu0 0
        %662 = vmatprep.subr.bf16.mxu0 0
        %663 = vmatpush1.bf16.msra.mxu0 0
        %664 = vmatprep.subr.bf16.mxu0 0
        %665 = vmatpush1.bf16.msra.mxu0 0
        %666 = vmatprep.subr.bf16.mxu0 0
        %667 = vmatpush1.bf16.msra.mxu0 0
        %668 = vmatprep.mubr.bf16.mxu0 0
        %669 = vmatmul.mubr.bf16.gmra.mrb[0].mxu0 %v564
        %v670 = vpop.f32.mrb[0].mxu0
        %v671 = vadd.f32 %v586, %v670
        %v672 = vpop.f32.mrb[0].mxu0
        %v673 = vpop.f32.mrb[0].mxu0
        %v674 = vadd.f32 %v586, %v673
        %v675 = vpop.f32.mrb[0].mxu0
        %676 = vdwg.mxu0
        %v677 = vmax.f32 %v671, 0.0
        %v678 = vmax.f32 %v674, 0.0
        %679 = vst [vmem:[%s324] sm:$0xff] %v677
        %680 = vst [vmem:[%s324 + $0x8] sm:$0xff] %v678
        %s681 = smul.u32 2, %s20
        %p682 = scmp.lt.s32.totalorder %s681, 3
        %s683 = scalar_select %p682, %s681, 3
        %s684 = smul.addr %s683, 8
        %s685 = scalar_lea.vmem %s7, %s684
        // Predicated region
        $region61: #{_lambda_.1} parent=47 // pred_check
          %p686 = pneg %p190
        $region62: #{_lambda_.1} parent=47 // pred_check_branch
          %688 = sbr.rel (%p686) target = $region64
        $region63: #{_lambda_.1} parent=47 // pred_region
          %s689 = smul.u32 2, %s20
        $region64: #{_lambda_.1} parent=47 // pred_fallthru
          _
      $region48: #{_lambda_.1} parent=5 // pred_fallthru
        _
      %p690 = scmp.le.s32.totalorder 2, %s15
      // Predicated region
      $region65: #{_lambda_.1} parent=5 // pred_check
        %p691 = pneg %p690
      $region66: #{_lambda_.1} parent=5 // pred_check_branch
        %693 = sbr.rel (%p691) target = $region68
      $region67: #{_lambda_.1} parent=5 // pred_region
        %s694 = ssub.s32 %s15, 2
        // Predicated region
        $region69: #{_lambda_.1} parent=67 // pred_check
          %p695 = pneg %p196
        $region70: #{_lambda_.1} parent=67 // pred_check_branch
          %697 = sbr.rel (%p695) target = $region72
        $region71: #{_lambda_.1} parent=67 // pred_region
          %s698 = smul.u32 2, %s21
          %p699 = scmp.lt.s32.totalorder %s698, 3
          %s700 = scalar_select %p699, %s698, 3
          %s701 = smul.addr %s700, 8
          %s702 = scalar_lea.vmem %s7, %s701
        $region72: #{_lambda_.1} parent=67 // pred_fallthru
          _
      $region68: #{_lambda_.1} parent=5 // pred_fallthru
        _
    $region6: #{_lambda_.1} parent=1 // loop_footer
      %s19 = sadd.s32 1, %s15
    $region7: #{_lambda_.1} parent=1 // loop_footer_branch
      %14 = sbr.rel target = $region3
    $region8: #{_lambda_.1} parent=1 // loop_exit
      _
    %703 = vsyncpa [#allocation3], 1
    %s704 = scalar_lea.sflag [#allocation3], 1
    %705 = vsyncpa %s704, 1
    %706 = vsyncpa [#allocation5], 1

// kernel: _lambda_.1
$region0: #{_lambda_.1}
  #allocation0 [shape = 'u32[]', space=smem, size = 0x4, offset = 0x4, fixed_abs, tag = 'smem constant byte address 0x4 - core index']
  #allocation1 [shape = 'u32[144,128]{1,0:T(1,128)}', space=vmem, size = 0x12000, scoped, tag = 'internal scratch']
  %s0 = inlined_call_operand.vmem [shape: bf16[32,128], index: 0, kind: input, shape index: {}]
  %s1 = inlined_call_operand.hbm [shape: bf16[128,128], index: 1, kind: input, shape index: {}]
  %s2 = inlined_call_operand.vmem [shape: f32[1,128], index: 2, kind: input, shape index: {}]
  %s3 = inlined_call_operand.hbm [shape: bf16[128,128], index: 3, kind: input, shape index: {}]
  %s4 = inlined_call_operand.vmem [shape: f32[1,128], index: 4, kind: input, shape index: {}]
  %s5 = inlined_call_operand.hbm [shape: bf16[128,128], index: 5, kind: input, shape index: {}]
  %s6 = inlined_call_operand.vmem [shape: f32[1,128], index: 6, kind: input, shape index: {}]
  %s7 = inlined_call_operand.vmem [shape: f32[32,128], index: 7, kind: output, shape index: {}]
  %s8 = sld [smem:[#allocation0]]
  $region73: #{_lambda_.1} parent=0
    _
  %s10 = ssub.s32 1, %s8
  %s11 = scalar_select 0, %s10, %s8
  $region1: #{_lambda_.1} parent=0
    #allocation2 [shape = 'u8[32768]{0}', space=vmem, size = 0x8000, scoped, tag = 'input window, operand 1, single buffered']
    #allocation3 [shape = 's32[2]{0}', space=sflag, size = 0x8, scoped, tag = 'scoped memory for _lambda_.1']
    #allocation4 [shape = 'u8[32768]{0}', space=vmem, size = 0x8000, scoped, tag = 'input window, operand 3, single buffered']
    #allocation5 [shape = 's32[1]{0}', space=sflag, size = 0x4, scoped, tag = 'scoped memory for _lambda_.1']
    #allocation6 [shape = 'u8[32768]{0}', space=vmem, size = 0x8000, scoped, tag = 'input window, operand 5, single buffered']
    %12 = vsyncpa [#allocation3], 0
    %13 = vsyncpa [#allocation5], 0
    loop: start=0, step=1, limit=4
    $region2: #{_lambda_.1} parent=1 // loop_pre_header
      _
    $region3: #{_lambda_.1} parent=1 // loop_header
      %s15 = sphi 0, %s19
      %p16 = scmp.ge.s32.totalorder %s15, 4
      %s25 = sphi 0, %s27
      %s28 = sphi 0, %s25
      %s29 = sphi 0, %s28
      %s45 = sphi 0, %s29
      %s49 = sphi 0, %s49
      %s51 = sphi 0, %s49
      %s52 = sphi 0, %s51
      %s66 = sphi 0, %s52
      %s70 = sphi 0, %s70
      %s72 = sphi 0, %s70
      %s73 = sphi 0, %s72
      %s87 = sphi 0, %s73
      %s91 = sphi 0, %s91
      %s93 = sphi 0, %s91
      %s94 = sphi 0, %s93
      %s108 = sphi 0, %s94
      %s112 = sphi 0, %s112
      %s114 = sphi 0, %s112
      %s115 = sphi 0, %s114
      %s129 = sphi 0, %s115
      %s133 = sphi 0, %s133
      %s135 = sphi 0, %s133
      %s136 = sphi 0, %s135
      %s150 = sphi 0, %s136
      %s154 = sphi 0, %s154
      %s156 = sphi 0, %s154
      %s157 = sphi 0, %s156
      %s171 = sphi 0, %s157
      %s177 = sphi 0, %s179
      %s180 = sphi 0, %s177
      %s181 = sphi 0, %s180
      %s197 = sphi 0, %s181
    $region4: #{_lambda_.1} parent=1 // loop_header_branch
      %18 = sbr.rel (%p16) target = $region8
    $region5: #{_lambda_.1} parent=1 // loop_body
      %s20 = ssub.s32 %s15, 1
      %s21 = ssub.s32 %s15, 2
      %s22 = sadd.s32 %s15, 1
      %s23 = ssub.s32 %s15, %s22
      %p24 = scmp.eq.s32.totalorder %s23, 0
      %s26 = sadd.s32 %s25, 1
      %s27 = scalar_select %p24, %s25, %s26
      %p30 = pneg %p24
      %p31 = scmp.eq.s32.totalorder %s15, 1
      %p32 = por %p30, %p31
      %p33 = scmp.ne.s32.totalorder %s25, %s28
      %p34 = scmp.eq.s32.totalorder %s15, 0
      %p35 = por %p33, %p34
      %p36 = scmp.ne.s32.totalorder %s25, %s28
      %p37 = scmp.eq.s32.totalorder %s20, 1
      %p38 = por %p36, %p37
      %p39 = scmp.ne.s32.totalorder %s28, %s29
      %p40 = scmp.eq.s32.totalorder %s20, 0
      %p41 = por %p39, %p40
      %p42 = scmp.ne.s32.totalorder %s28, %s29
      %p43 = scmp.eq.s32.totalorder %s21, 1
      %p44 = por %p42, %p43
      %p46 = scmp.ne.s32.totalorder %s29, %s45
      %p47 = scmp.eq.s32.totalorder %s21, 0
      %p48 = por %p46, %p47
      %s50 = sadd.s32 %s49, 1
      %p53 = scmp.eq.s32.totalorder %s15, 1
      %p54 = scmp.ne.s32.totalorder %s49, %s51
      %p55 = scmp.eq.s32.totalorder %s15, 0
      %p56 = por %p54, %p55
      %p57 = scmp.ne.s32.totalorder %s49, %s51
      %p58 = scmp.eq.s32.totalorder %s20, 1
      %p59 = por %p57, %p58
      %p60 = scmp.ne.s32.totalorder %s51, %s52
      %p61 = scmp.eq.s32.totalorder %s20, 0
      %p62 = por %p60, %p61
      %p63 = scmp.ne.s32.totalorder %s51, %s52
      %p64 = scmp.eq.s32.totalorder %s21, 1
      %p65 = por %p63, %p64
      %p67 = scmp.ne.s32.totalorder %s52, %s66
      %p68 = scmp.eq.s32.totalorder %s21, 0
      %p69 = por %p67, %p68
      %s71 = sadd.s32 %s70, 1
      %p74 = scmp.eq.s32.totalorder %s15, 1
      %p75 = scmp.ne.s32.totalorder %s70, %s72
      %p76 = scmp.eq.s32.totalorder %s15, 0
      %p77 = por %p75, %p76
      %p78 = scmp.ne.s32.totalorder %s70, %s72
      %p79 = scmp.eq.s32.totalorder %s20, 1
      %p80 = por %p78, %p79
      %p81 = scmp.ne.s32.totalorder %s72, %s73
      %p82 = scmp.eq.s32.totalorder %s20, 0
      %p83 = por %p81, %p82
      %p84 = scmp.ne.s32.totalorder %s72, %s73
      %p85 = scmp.eq.s32.totalorder %s21, 1
      %p86 = por %p84, %p85
      %p88 = scmp.ne.s32.totalorder %s73, %s87
      %p89 = scmp.eq.s32.totalorder %s21, 0
      %p90 = por %p88, %p89
      %s92 = sadd.s32 %s91, 1
      %p95 = scmp.eq.s32.totalorder %s15, 1
      %p96 = scmp.ne.s32.totalorder %s91, %s93
      %p97 = scmp.eq.s32.totalorder %s15, 0
      %p98 = por %p96, %p97
      %p99 = scmp.ne.s32.totalorder %s91, %s93
      %p100 = scmp.eq.s32.totalorder %s20, 1
      %p101 = por %p99, %p100
      %p102 = scmp.ne.s32.totalorder %s93, %s94
      %p103 = scmp.eq.s32.totalorder %s20, 0
      %p104 = por %p102, %p103
      %p105 = scmp.ne.s32.totalorder %s93, %s94
      %p106 = scmp.eq.s32.totalorder %s21, 1
      %p107 = por %p105, %p106
      %p109 = scmp.ne.s32.totalorder %s94, %s108
      %p110 = scmp.eq.s32.totalorder %s21, 0
      %p111 = por %p109, %p110
      %s113 = sadd.s32 %s112, 1
      %p116 = scmp.eq.s32.totalorder %s15, 1
      %p117 = scmp.ne.s32.totalorder %s112, %s114
      %p118 = scmp.eq.s32.totalorder %s15, 0
      %p119 = por %p117, %p118
      %p120 = scmp.ne.s32.totalorder %s112, %s114
      %p121 = scmp.eq.s32.totalorder %s20, 1
      %p122 = por %p120, %p121
      %p123 = scmp.ne.s32.totalorder %s114, %s115
      %p124 = scmp.eq.s32.totalorder %s20, 0
      %p125 = por %p123, %p124
      %p126 = scmp.ne.s32.totalorder %s114, %s115
      %p127 = scmp.eq.s32.totalorder %s21, 1
      %p128 = por %p126, %p127
      %p130 = scmp.ne.s32.totalorder %s115, %s129
      %p131 = scmp.eq.s32.totalorder %s21, 0
      %p132 = por %p130, %p131
      %s134 = sadd.s32 %s133, 1
      %p137 = scmp.eq.s32.totalorder %s15, 1
      %p138 = scmp.ne.s32.totalorder %s133, %s135
      %p139 = scmp.eq.s32.totalorder %s15, 0
      %p140 = por %p138, %p139
      %p141 = scmp.ne.s32.totalorder %s133, %s135
      %p142 = scmp.eq.s32.totalorder %s20, 1
      %p143 = por %p141, %p142
      %p144 = scmp.ne.s32.totalorder %s135, %s136
      %p145 = scmp.eq.s32.totalorder %s20, 0
      %p146 = por %p144, %p145
      %p147 = scmp.ne.s32.totalorder %s135, %s136
      %p148 = scmp.eq.s32.totalorder %s21, 1
      %p149 = por %p147, %p148
      %p151 = scmp.ne.s32.totalorder %s136, %s150
      %p152 = scmp.eq.s32.totalorder %s21, 0
      %p153 = por %p151, %p152
      %s155 = sadd.s32 %s154, 1
      %p158 = scmp.eq.s32.totalorder %s15, 1
      %p159 = scmp.ne.s32.totalorder %s154, %s156
      %p160 = scmp.eq.s32.totalorder %s15, 0
      %p161 = por %p159, %p160
      %p162 = scmp.ne.s32.totalorder %s154, %s156
      %p163 = scmp.eq.s32.totalorder %s20, 1
      %p164 = por %p162, %p163
      %p165 = scmp.ne.s32.totalorder %s156, %s157
      %p166 = scmp.eq.s32.totalorder %s20, 0
      %p167 = por %p165, %p166
      %p168 = scmp.ne.s32.totalorder %s156, %s157
      %p169 = scmp.eq.s32.totalorder %s21, 1
      %p170 = por %p168, %p169
      %p172 = scmp.ne.s32.totalorder %s157, %s171
      %p173 = scmp.eq.s32.totalorder %s21, 0
      %p174 = por %p172, %p173
      %s175 = ssub.s32 %s15, %s22
      %p176 = scmp.eq.s32.totalorder %s175, 0
      %s178 = sadd.s32 %s177, 1
      %s179 = scalar_select %p176, %s177, %s178
      %p182 = pneg %p176
      %p183 = scmp.eq.s32.totalorder %s15, 1
      %p184 = por %p182, %p183
      %p185 = scmp.ne.s32.totalorder %s177, %s180
      %p186 = scmp.eq.s32.totalorder %s15, 0
      %p187 = por %p185, %p186
      %p188 = scmp.ne.s32.totalorder %s177, %s180
      %p189 = scmp.eq.s32.totalorder %s20, 1
      %p190 = por %p188, %p189
      %p191 = scmp.ne.s32.totalorder %s180, %s181
      %p192 = scmp.eq.s32.totalorder %s20, 0
      %p193 = por %p191, %p192
      %p194 = scmp.ne.s32.totalorder %s180, %s181
      %p195 = scmp.eq.s32.totalorder %s21, 1
      %p196 = por %p194, %p195
      %p198 = scmp.ne.s32.totalorder %s181, %s197
      %p199 = scmp.eq.s32.totalorder %s21, 0
      %p200 = por %p198, %p199
      %p201 = scmp.le.s32.totalorder 1, %s15
      %p202 = scmp.lt.s32.totalorder %s15, 3
      %p203 = pnand %p201, %p202
      %p204 = pneg %p203
      // Predicated region
      $region9: #{_lambda_.1} parent=5 // pred_check
        _
      $region10: #{_lambda_.1} parent=5 // pred_check_branch
        %206 = sbr.rel (%p203) target = $region12
      $region11: #{_lambda_.1} parent=5 // pred_region
        %s207 = ssub.s32 %s15, 1
        // Predicated region
        $region13: #{_lambda_.1} parent=11 // pred_check
          %p208 = pneg %p62
        $region14: #{_lambda_.1} parent=11 // pred_check_branch
          %210 = sbr.rel (%p208) target = $region16
        $region15: #{_lambda_.1} parent=11 // pred_region
          %s212 = ssub.s32 1024, 1024
          %213 = vsyncadd [#allocation3], %s212
          %s214 = sshll.u32 [#allocation2], 4
          %s215 = int_to_ptr.vmem [resolvable:$true] %s214
          %220 = dma.hbm_to_vmem [thread:$0]  %s1, 1024, %s215, [#allocation3], 64, 64, 4
        $region16: #{_lambda_.1} parent=11 // pred_fallthru
          _
        // Predicated region
        $region17: #{_lambda_.1} parent=11 // pred_check
          %p221 = pneg %p83
        $region18: #{_lambda_.1} parent=11 // pred_check_branch
          %223 = sbr.rel (%p221) target = $region20
        $region19: #{_lambda_.1} parent=11 // pred_region
          _
        $region20: #{_lambda_.1} parent=11 // pred_fallthru
          _
        // Predicated region
        $region21: #{_lambda_.1} parent=11 // pred_check
          %p224 = pneg %p104
        $region22: #{_lambda_.1} parent=11 // pred_check_branch
          %226 = sbr.rel (%p224) target = $region24
        $region23: #{_lambda_.1} parent=11 // pred_region
          %s228 = ssub.s32 1024, 1024
          %229 = vsyncadd [#allocation5], %s228
          %s230 = sshll.u32 [#allocation4], 4
          %s231 = int_to_ptr.vmem [resolvable:$true] %s230
          %236 = dma.hbm_to_vmem [thread:$0]  %s3, 1024, %s231, [#allocation5], 64, 64, 4
        $region24: #{_lambda_.1} parent=11 // pred_fallthru
          _
        // Predicated region
        $region25: #{_lambda_.1} parent=11 // pred_check
          %p237 = pneg %p125
        $region26: #{_lambda_.1} parent=11 // pred_check_branch
          %239 = sbr.rel (%p237) target = $region28
        $region27: #{_lambda_.1} parent=11 // pred_region
          _
        $region28: #{_lambda_.1} parent=11 // pred_fallthru
          _
        // Predicated region
        $region29: #{_lambda_.1} parent=11 // pred_check
          %p240 = pneg %p146
        $region30: #{_lambda_.1} parent=11 // pred_check_branch
          %242 = sbr.rel (%p240) target = $region32
        $region31: #{_lambda_.1} parent=11 // pred_region
          %s244 = ssub.s32 1024, 1024
          %245 = vsyncadd [#allocation5], %s244
          %s246 = sshll.u32 [#allocation6], 4
          %s247 = int_to_ptr.vmem [resolvable:$true] %s246
          %252 = dma.hbm_to_vmem [thread:$0]  %s5, 1024, %s247, [#allocation5], 64, 64, 4
        $region32: #{_lambda_.1} parent=11 // pred_fallthru
          _
        // Predicated region
        $region33: #{_lambda_.1} parent=11 // pred_check
          %p253 = pneg %p167
        $region34: #{_lambda_.1} parent=11 // pred_check_branch
          %255 = sbr.rel (%p253) target = $region36
        $region35: #{_lambda_.1} parent=11 // pred_region
          _
        $region36: #{_lambda_.1} parent=11 // pred_fallthru
          _
      $region12: #{_lambda_.1} parent=5 // pred_fallthru
        _
      %p256 = scmp.lt.s32.totalorder %s15, 2
      // Predicated region
      $region37: #{_lambda_.1} parent=5 // pred_check
        %p257 = pneg %p256
      $region38: #{_lambda_.1} parent=5 // pred_check_branch
        %259 = sbr.rel (%p257) target = $region40
      $region39: #{_lambda_.1} parent=5 // pred_region
        // Predicated region
        $region41: #{_lambda_.1} parent=39 // pred_check
          %p260 = pneg %p35
        $region42: #{_lambda_.1} parent=39 // pred_check_branch
          %262 = sbr.rel (%p260) target = $region44
        $region43: #{_lambda_.1} parent=39 // pred_region
          %s263 = smul.u32 2, %s15
          %p264 = scmp.lt.s32.totalorder %s263, 3
          %s265 = scalar_select %p264, %s263, 3
          %s266 = smul.addr %s265, 4
          %s267 = scalar_lea.vmem %s0, %s266
          %s268 = smul.u32 2, %s15
        $region44: #{_lambda_.1} parent=39 // pred_fallthru
          _
      $region40: #{_lambda_.1} parent=5 // pred_fallthru
        _
      %p269 = scmp.le.s32.totalorder 1, %s15
      %p270 = scmp.lt.s32.totalorder %s15, 3
      %p271 = pnand %p269, %p270
      %p272 = pneg %p271
      // Predicated region
      $region45: #{_lambda_.1} parent=5 // pred_check
        _
      $region46: #{_lambda_.1} parent=5 // pred_check_branch
        %274 = sbr.rel (%p271) target = $region48
      $region47: #{_lambda_.1} parent=5 // pred_region
        %s275 = ssub.s32 %s15, 1
        // Predicated region
        $region49: #{_lambda_.1} parent=47 // pred_check
          %p276 = pneg %p62
        $region50: #{_lambda_.1} parent=47 // pred_check_branch
          %278 = sbr.rel (%p276) target = $region52
        $region51: #{_lambda_.1} parent=47 // pred_region
          %279 = dma.done [#allocation3], 1024
        $region52: #{_lambda_.1} parent=47 // pred_fallthru
          _
        // Predicated region
        $region53: #{_lambda_.1} parent=47 // pred_check
          %p280 = pneg %p104
        $region54: #{_lambda_.1} parent=47 // pred_check_branch
          %282 = sbr.rel (%p280) target = $region56
        $region55: #{_lambda_.1} parent=47 // pred_region
          %283 = dma.done [#allocation5], 1024
        $region56: #{_lambda_.1} parent=47 // pred_fallthru
          _
        // Predicated region
        $region57: #{_lambda_.1} parent=47 // pred_check
          %p284 = pneg %p146
        $region58: #{_lambda_.1} parent=47 // pred_check_branch
          %286 = sbr.rel (%p284) target = $region60
        $region59: #{_lambda_.1} parent=47 // pred_region
          %287 = dma.done [#allocation5], 1024
        $region60: #{_lambda_.1} parent=47 // pred_fallthru
          _
        %s288 = smul.u32 2, %s20
        %p289 = scmp.lt.s32.totalorder %s288, 3
        %s290 = scalar_select %p289, %s288, 3
        %s291 = smul.addr %s290, 4
        %s292 = scalar_lea.vmem %s0, %s291
        %p293 = pneg %p41
        %p294 = pneg %p38
        %p295 = pneg %p62
        %p296 = pneg %p59
        %p297 = pneg %p83
        %p298 = pneg %p80
        %p299 = pneg %p104
        %p300 = pneg %p101
        %p301 = pneg %p125
        %p302 = pneg %p122
        %p303 = pneg %p146
        %p304 = pneg %p143
        %p305 = pneg %p167
        %p306 = pneg %p164
        %p307 = pneg %p193
        %p308 = pneg %p190
        %s309 = smul.u32 2, %s20
        %p310 = scmp.lt.s32.totalorder %s309, 3
        %s311 = scalar_select %p310, %s309, 3
        %s312 = smul.addr %s311, 8
        %s313 = scalar_lea.vmem %s7, %s312
        %s314 = smul.u32 2, %s20
        %p315 = scmp.lt.s32.totalorder %s314, 3
        %s316 = scalar_select %p315, %s314, 3
        %s317 = smul.addr %s316, 4
        %s318 = scalar_lea.vmem %s0, %s317
        %s319 = smul.u32 2, %s20
        %s320 = smul.u32 2, %s20
        %p321 = scmp.lt.s32.totalorder %s320, 3
        %s322 = scalar_select %p321, %s320, 3
        %s323 = smul.addr %s322, 8
        %s324 = scalar_lea.vmem %s7, %s323
        %s325 = smul.u32 2, %s20
        %v327 = vld [vmem:[%s318] sm:$0xf]
        %v328 = vld [vmem:[%s318 + $0x4] sm:$0xf]
        %v329 = vld [vmem:[#allocation2] sm:$0xf]
        %v330 = vld [vmem:[#allocation2 + $0x4] sm:$0xf]
        %v331 = vld [vmem:[#allocation2 + $0x8] sm:$0xf]
        %v332 = vld [vmem:[#allocation2 + $0xc] sm:$0xf]
        %v333 = vld [vmem:[#allocation2 + $0x10] sm:$0xf]
        %v334 = vld [vmem:[#allocation2 + $0x14] sm:$0xf]
        %v335 = vld [vmem:[#allocation2 + $0x18] sm:$0xf]
        %v336 = vld [vmem:[#allocation2 + $0x1c] sm:$0xf]
        %v337 = vld [vmem:[#allocation2 + $0x20] sm:$0xf]
        %v338 = vld [vmem:[#allocation2 + $0x24] sm:$0xf]
        %v339 = vld [vmem:[#allocation2 + $0x28] sm:$0xf]
        %v340 = vld [vmem:[#allocation2 + $0x2c] sm:$0xf]
        %v341 = vld [vmem:[#allocation2 + $0x30] sm:$0xf]
        %v342 = vld [vmem:[#allocation2 + $0x34] sm:$0xf]
        %v343 = vld [vmem:[#allocation2 + $0x38] sm:$0xf]
        %v344 = vld [vmem:[#allocation2 + $0x3c] sm:$0xf]
        %v345 = vld [vmem:[%s2] sm:$0x1]
        %v347 = vlaneseq
        %v348 = vshrl.u32 %v347, 7
        %v349 = vsub.s32 0, %v348
        %v350 = vrot.slane %v345, %v349
        %v354 = vunpack.c.l.b16 %v327
        %v355 = vunpack.c.l.b16 %v328
        %v356 = vpack.c.b16 %v355, %v354
        %v374 = vunpack.c.l.b16 %v329
        %v375 = vunpack.c.l.b16 %v330
        %v376 = vunpack.c.l.b16 %v331
        %v377 = vunpack.c.l.b16 %v332
        %v378 = vunpack.c.l.b16 %v333
        %v379 = vunpack.c.l.b16 %v334
        %v380 = vunpack.c.l.b16 %v335
        %v381 = vunpack.c.l.b16 %v336
        %v382 = vunpack.c.l.b16 %v337
        %v383 = vunpack.c.l.b16 %v338
        %v384 = vunpack.c.l.b16 %v339
        %v385 = vunpack.c.l.b16 %v340
        %v386 = vunpack.c.l.b16 %v341
        %v387 = vunpack.c.l.b16 %v342
        %v388 = vunpack.c.l.b16 %v343
        %v389 = vunpack.c.l.b16 %v344
        %v390 = vpack.c.b16 %v375, %v374
        %v391 = vpack.c.b16 %v377, %v376
        %v392 = vpack.c.b16 %v379, %v378
        %v393 = vpack.c.b16 %v381, %v380
        %v394 = vpack.c.b16 %v383, %v382
        %v395 = vpack.c.b16 %v385, %v384
        %v396 = vpack.c.b16 %v387, %v386
        %v397 = vpack.c.b16 %v389, %v388
        %406 = vmatprep.subr.bf16.mxu0 0
        %407 = vmatpush1.bf16.msra.mxu0 %v390
        %408 = vmatprep.subr.bf16.mxu0 0
        %409 = vmatpush1.bf16.msra.mxu0 %v391
        %410 = vmatprep.subr.bf16.mxu0 0
        %411 = vmatpush1.bf16.msra.mxu0 %v392
        %412 = vmatprep.subr.bf16.mxu0 0
        %413 = vmatpush1.bf16.msra.mxu0 %v393
        %414 = vmatprep.subr.bf16.mxu0 0
        %415 = vmatpush1.bf16.msra.mxu0 %v394
        %416 = vmatprep.subr.bf16.mxu0 0
        %417 = vmatpush1.bf16.msra.mxu0 %v395
        %418 = vmatprep.subr.bf16.mxu0 0
        %419 = vmatpush1.bf16.msra.mxu0 %v396
        %420 = vmatprep.subr.bf16.mxu0 0
        %421 = vmatpush1.bf16.msra.mxu0 %v397
        %422 = vmatprep.subr.bf16.mxu0 0
        %423 = vmatpush1.bf16.msra.mxu0 0
        %424 = vmatprep.subr.bf16.mxu0 0
        %425 = vmatpush1.bf16.msra.mxu0 0
        %426 = vmatprep.subr.bf16.mxu0 0
        %427 = vmatpush1.bf16.msra.mxu0 0
        %428 = vmatprep.subr.bf16.mxu0 0
        %429 = vmatpush1.bf16.msra.mxu0 0
        %430 = vmatprep.subr.bf16.mxu0 0
        %431 = vmatpush1.bf16.msra.mxu0 0
        %432 = vmatprep.subr.bf16.mxu0 0
        %433 = vmatpush1.bf16.msra.mxu0 0
        %434 = vmatprep.subr.bf16.mxu0 0
        %435 = vmatpush1.bf16.msra.mxu0 0
        %436 = vmatprep.subr.bf16.mxu0 0
        %437 = vmatpush1.bf16.msra.mxu0 0
        %438 = vmatprep.mubr.bf16.mxu0 0
        %439 = vmatmul.mubr.bf16.gmra.mrb[0].mxu0 %v356
        %v440 = vpop.f32.mrb[0].mxu0
        %v441 = vadd.f32 %v350, %v440
        %v442 = vpop.f32.mrb[0].mxu0
        %v443 = vpop.f32.mrb[0].mxu0
        %v444 = vadd.f32 %v350, %v443
        %v445 = vpop.f32.mrb[0].mxu0
        %446 = vdwg.mxu0
        %v447 = vmax.f32 %v441, 0.0
        %v448 = vmax.f32 %v444, 0.0
        %v449 = vpack.c.bf16 %v448, %v447
        %v450 = vld [vmem:[#allocation4] sm:$0xf]
        %v451 = vld [vmem:[#allocation4 + $0x4] sm:$0xf]
        %v452 = vld [vmem:[#allocation4 + $0x8] sm:$0xf]
        %v453 = vld [vmem:[#allocation4 + $0xc] sm:$0xf]
        %v454 = vld [vmem:[#allocation4 + $0x10] sm:$0xf]
        %v455 = vld [vmem:[#allocation4 + $0x14] sm:$0xf]
        %v456 = vld [vmem:[#allocation4 + $0x18] sm:$0xf]
        %v457 = vld [vmem:[#allocation4 + $0x1c] sm:$0xf]
        %v458 = vld [vmem:[#allocation4 + $0x20] sm:$0xf]
        %v459 = vld [vmem:[#allocation4 + $0x24] sm:$0xf]
        %v460 = vld [vmem:[#allocation4 + $0x28] sm:$0xf]
        %v461 = vld [vmem:[#allocation4 + $0x2c] sm:$0xf]
        %v462 = vld [vmem:[#allocation4 + $0x30] sm:$0xf]
        %v463 = vld [vmem:[#allocation4 + $0x34] sm:$0xf]
        %v464 = vld [vmem:[#allocation4 + $0x38] sm:$0xf]
        %v465 = vld [vmem:[#allocation4 + $0x3c] sm:$0xf]
        %v466 = vld [vmem:[%s4] sm:$0x1]
        %v468 = vlaneseq
        %v469 = vshrl.u32 %v468, 7
        %v470 = vsub.s32 0, %v469
        %v471 = vrot.slane %v466, %v470
        %v489 = vunpack.c.l.b16 %v450
        %v490 = vunpack.c.l.b16 %v451
        %v491 = vunpack.c.l.b16 %v452
        %v492 = vunpack.c.l.b16 %v453
        %v493 = vunpack.c.l.b16 %v454
        %v494 = vunpack.c.l.b16 %v455
        %v495 = vunpack.c.l.b16 %v456
        %v496 = vunpack.c.l.b16 %v457
        %v497 = vunpack.c.l.b16 %v458
        %v498 = vunpack.c.l.b16 %v459
        %v499 = vunpack.c.l.b16 %v460
        %v500 = vunpack.c.l.b16 %v461
        %v501 = vunpack.c.l.b16 %v462
        %v502 = vunpack.c.l.b16 %v463
        %v503 = vunpack.c.l.b16 %v464
        %v504 = vunpack.c.l.b16 %v465
        %v505 = vpack.c.b16 %v490, %v489
        %v506 = vpack.c.b16 %v492, %v491
        %v507 = vpack.c.b16 %v494, %v493
        %v508 = vpack.c.b16 %v496, %v495
        %v509 = vpack.c.b16 %v498, %v497
        %v510 = vpack.c.b16 %v500, %v499
        %v511 = vpack.c.b16 %v502, %v501
        %v512 = vpack.c.b16 %v504, %v503
        %521 = vmatprep.subr.bf16.mxu0 0
        %522 = vmatpush1.bf16.msra.mxu0 %v505
        %523 = vmatprep.subr.bf16.mxu0 0
        %524 = vmatpush1.bf16.msra.mxu0 %v506
        %525 = vmatprep.subr.bf16.mxu0 0
        %526 = vmatpush1.bf16.msra.mxu0 %v507
        %527 = vmatprep.subr.bf16.mxu0 0
        %528 = vmatpush1.bf16.msra.mxu0 %v508
        %529 = vmatprep.subr.bf16.mxu0 0
        %530 = vmatpush1.bf16.msra.mxu0 %v509
        %531 = vmatprep.subr.bf16.mxu0 0
        %532 = vmatpush1.bf16.msra.mxu0 %v510
        %533 = vmatprep.subr.bf16.mxu0 0
        %534 = vmatpush1.bf16.msra.mxu0 %v511
        %535 = vmatprep.subr.bf16.mxu0 0
        %536 = vmatpush1.bf16.msra.mxu0 %v512
        %537 = vmatprep.subr.bf16.mxu0 0
        %538 = vmatpush1.bf16.msra.mxu0 0
        %539 = vmatprep.subr.bf16.mxu0 0
        %540 = vmatpush1.bf16.msra.mxu0 0
        %541 = vmatprep.subr.bf16.mxu0 0
        %542 = vmatpush1.bf16.msra.mxu0 0
        %543 = vmatprep.subr.bf16.mxu0 0
        %544 = vmatpush1.bf16.msra.mxu0 0
        %545 = vmatprep.subr.bf16.mxu0 0
        %546 = vmatpush1.bf16.msra.mxu0 0
        %547 = vmatprep.subr.bf16.mxu0 0
        %548 = vmatpush1.bf16.msra.mxu0 0
        %549 = vmatprep.subr.bf16.mxu0 0
        %550 = vmatpush1.bf16.msra.mxu0 0
        %551 = vmatprep.subr.bf16.mxu0 0
        %552 = vmatpush1.bf16.msra.mxu0 0
        %553 = vmatprep.mubr.bf16.mxu0 0
        %554 = vmatmul.mubr.bf16.gmra.mrb[0].mxu0 %v449
        %v555 = vpop.f32.mrb[0].mxu0
        %v556 = vadd.f32 %v471, %v555
        %v557 = vpop.f32.mrb[0].mxu0
        %v558 = vpop.f32.mrb[0].mxu0
        %v559 = vadd.f32 %v471, %v558
        %v560 = vpop.f32.mrb[0].mxu0
        %561 = vdwg.mxu0
        %v562 = vmax.f32 %v556, 0.0
        %v563 = vmax.f32 %v559, 0.0
        %v564 = vpack.c.bf16 %v563, %v562
        %v565 = vld [vmem:[#allocation6] sm:$0xf]
        %v566 = vld [vmem:[#allocation6 + $0x4] sm:$0xf]
        %v567 = vld [vmem:[#allocation6 + $0x8] sm:$0xf]
        %v568 = vld [vmem:[#allocation6 + $0xc] sm:$0xf]
        %v569 = vld [vmem:[#allocation6 + $0x10] sm:$0xf]
        %v570 = vld [vmem:[#allocation6 + $0x14] sm:$0xf]
        %v571 = vld [vmem:[#allocation6 + $0x18] sm:$0xf]
        %v572 = vld [vmem:[#allocation6 + $0x1c] sm:$0xf]
        %v573 = vld [vmem:[#allocation6 + $0x20] sm:$0xf]
        %v574 = vld [vmem:[#allocation6 + $0x24] sm:$0xf]
        %v575 = vld [vmem:[#allocation6 + $0x28] sm:$0xf]
        %v576 = vld [vmem:[#allocation6 + $0x2c] sm:$0xf]
        %v577 = vld [vmem:[#allocation6 + $0x30] sm:$0xf]
        %v578 = vld [vmem:[#allocation6 + $0x34] sm:$0xf]
        %v579 = vld [vmem:[#allocation6 + $0x38] sm:$0xf]
        %v580 = vld [vmem:[#allocation6 + $0x3c] sm:$0xf]
        %v581 = vld [vmem:[%s6] sm:$0x1]
        %v583 = vlaneseq
        %v584 = vshrl.u32 %v583, 7
        %v585 = vsub.s32 0, %v584
        %v586 = vrot.slane %v581, %v585
        %v604 = vunpack.c.l.b16 %v565
        %v605 = vunpack.c.l.b16 %v566
        %v606 = vunpack.c.l.b16 %v567
        %v607 = vunpack.c.l.b16 %v568
        %v608 = vunpack.c.l.b16 %v569
        %v609 = vunpack.c.l.b16 %v570
        %v610 = vunpack.c.l.b16 %v571
        %v611 = vunpack.c.l.b16 %v572
        %v612 = vunpack.c.l.b16 %v573
        %v613 = vunpack.c.l.b16 %v574
        %v614 = vunpack.c.l.b16 %v575
        %v615 = vunpack.c.l.b16 %v576
        %v616 = vunpack.c.l.b16 %v577
        %v617 = vunpack.c.l.b16 %v578
        %v618 = vunpack.c.l.b16 %v579
        %v619 = vunpack.c.l.b16 %v580
        %v620 = vpack.c.b16 %v605, %v604
        %v621 = vpack.c.b16 %v607, %v606
        %v622 = vpack.c.b16 %v609, %v608
        %v623 = vpack.c.b16 %v611, %v610
        %v624 = vpack.c.b16 %v613, %v612
        %v625 = vpack.c.b16 %v615, %v614
        %v626 = vpack.c.b16 %v617, %v616
        %v627 = vpack.c.b16 %v619, %v618
        %636 = vmatprep.subr.bf16.mxu0 0
        %637 = vmatpush1.bf16.msra.mxu0 %v620
        %638 = vmatprep.subr.bf16.mxu0 0
        %639 = vmatpush1.bf16.msra.mxu0 %v621
        %640 = vmatprep.subr.bf16.mxu0 0
        %641 = vmatpush1.bf16.msra.mxu0 %v622
        %642 = vmatprep.subr.bf16.mxu0 0
        %643 = vmatpush1.bf16.msra.mxu0 %v623
        %644 = vmatprep.subr.bf16.mxu0 0
        %645 = vmatpush1.bf16.msra.mxu0 %v624
        %646 = vmatprep.subr.bf16.mxu0 0
        %647 = vmatpush1.bf16.msra.mxu0 %v625
        %648 = vmatprep.subr.bf16.mxu0 0
        %649 = vmatpush1.bf16.msra.mxu0 %v626
        %650 = vmatprep.subr.bf16.mxu0 0
        %651 = vmatpush1.bf16.msra.mxu0 %v627
        %652 = vmatprep.subr.bf16.mxu0 0
        %653 = vmatpush1.bf16.msra.mxu0 0
        %654 = vmatprep.subr.bf16.mxu0 0
        %655 = vmatpush1.bf16.msra.mxu0 0
        %656 = vmatprep.subr.bf16.mxu0 0
        %657 = vmatpush1.bf16.msra.mxu0 0
        %658 = vmatprep.subr.bf16.mxu0 0
        %659 = vmatpush1.bf16.msra.mxu0 0
        %660 = vmatprep.subr.bf16.mxu0 0
        %661 = vmatpush1.bf16.msra.mxu0 0
        %662 = vmatprep.subr.bf16.mxu0 0
        %663 = vmatpush1.bf16.msra.mxu0 0
        %664 = vmatprep.subr.bf16.mxu0 0
        %665 = vmatpush1.bf16.msra.mxu0 0
        %666 = vmatprep.subr.bf16.mxu0 0
        %667 = vmatpush1.bf16.msra.mxu0 0
        %668 = vmatprep.mubr.bf16.mxu0 0
        %669 = vmatmul.mubr.bf16.gmra.mrb[0].mxu0 %v564
        %v670 = vpop.f32.mrb[0].mxu0
        %v671 = vadd.f32 %v586, %v670
        %v672 = vpop.f32.mrb[0].mxu0
        %v673 = vpop.f32.mrb[0].mxu0
        %v674 = vadd.f32 %v586, %v673
        %v675 = vpop.f32.mrb[0].mxu0
        %676 = vdwg.mxu0
        %v677 = vmax.f32 %v671, 0.0
        %v678 = vmax.f32 %v674, 0.0
        %679 = vst [vmem:[%s324] sm:$0xff] %v677
        %680 = vst [vmem:[%s324 + $0x8] sm:$0xff] %v678
        %s681 = smul.u32 2, %s20
        %p682 = scmp.lt.s32.totalorder %s681, 3
        %s683 = scalar_select %p682, %s681, 3
        %s684 = smul.addr %s683, 8
        %s685 = scalar_lea.vmem %s7, %s684
        // Predicated region
        $region61: #{_lambda_.1} parent=47 // pred_check
          %p686 = pneg %p190
        $region62: #{_lambda_.1} parent=47 // pred_check_branch
          %688 = sbr.rel (%p686) target = $region64
        $region63: #{_lambda_.1} parent=47 // pred_region
          %s689 = smul.u32 2, %s20
        $region64: #{_lambda_.1} parent=47 // pred_fallthru
          _
      $region48: #{_lambda_.1} parent=5 // pred_fallthru
        _
      %p690 = scmp.le.s32.totalorder 2, %s15
      // Predicated region
      $region65: #{_lambda_.1} parent=5 // pred_check
        %p691 = pneg %p690
      $region66: #{_lambda_.1} parent=5 // pred_check_branch
        %693 = sbr.rel (%p691) target = $region68
      $region67: #{_lambda_.1} parent=5 // pred_region
        %s694 = ssub.s32 %s15, 2
        // Predicated region
        $region69: #{_lambda_.1} parent=67 // pred_check
          %p695 = pneg %p196
        $region70: #{_lambda_.1} parent=67 // pred_check_branch
          %697 = sbr.rel (%p695) target = $region72
        $region71: #{_lambda_.1} parent=67 // pred_region
          %s698 = smul.u32 2, %s21
          %p699 = scmp.lt.s32.totalorder %s698, 3
          %s700 = scalar_select %p699, %s698, 3
          %s701 = smul.addr %s700, 8
          %s702 = scalar_lea.vmem %s7, %s701
        $region72: #{_lambda_.1} parent=67 // pred_fallthru
          _
      $region68: #{_lambda_.1} parent=5 // pred_fallthru
        _
    $region6: #{_lambda_.1} parent=1 // loop_footer
      %s19 = sadd.s32 1, %s15
    $region7: #{_lambda_.1} parent=1 // loop_footer_branch
      %14 = sbr.rel target = $region3
    $region8: #{_lambda_.1} parent=1 // loop_exit
      _
    %703 = vsyncpa [#allocation3], 1
    %s704 = scalar_lea.sflag [#allocation3], 1
    %705 = vsyncpa %s704, 1
    %706 = vsyncpa [#allocation5], 1

</llo_original>
